<compile_context>
chip_gen: v7x
topology: tpu7x:2x2x1
jax: 0.10.0
libtpu: 0.0.40
codegen_flags: <defaults>
</compile_context>

<pallas_src>
import jax
import jax.numpy as jnp
from jax import lax
from jax.experimental import pallas as pl
from jax.experimental.pallas import tpu as pltpu

BN_EPS = 1e-5


def _pool_bounds(z, size):
    """Input-index window [lo, hi) of MaxPool3d(k=3, s=2, p=1) output index z."""
    return max(0, 2 * z - 1), min(size, 2 * z + 2)


def _maxtree(xs):
    r = xs[0]
    for t in xs[1:]:
        r = jnp.maximum(r, t)
    return r


# ----------------------------- fused Pallas kernel -------------------------- #

def _make_fused_kernel(n, od, oh, ow, cout):
    """conv (matmul, gridded over K) + BN + ReLU + separable MaxPool3d(3,2,1)."""
    opd = (od - 1) // 2 + 1
    oph = (oh - 1) // 2 + 1
    opw = (ow - 1) // 2 + 1
    vol = od * oh * ow
    m = n * vol                      # rows of the conv output / BN sample count

    def kernel(p_ref, w_ref, g_ref, b_ref, o_ref, acc_ref):
        # p_ref: (M, tk) bf16 im2col slab    w_ref: (tk, C) bf16 weight slab
        # g/b_ref: (1, C) f32 BN gamma/beta  o_ref: (opd*oph*opw, n*C) f32
        # acc_ref: (M, C) f32 accumulator (VMEM scratch, grid-resident)
        k = pl.program_id(0)

        @pl.when(k == 0)
        def _():
            acc_ref[...] = jnp.zeros_like(acc_ref)

        # bf16 MXU operands, f32 accumulation.
        acc_ref[...] += jnp.dot(p_ref[...], w_ref[...],
                                preferred_element_type=jnp.float32)

        @pl.when(k == pl.num_programs(0) - 1)
        def _():
            acc = acc_ref[...]                                    # (M, C) f32
            # Pack the n batch images side-by-side along lanes so every
            # post-matmul VPU/XLU op runs on lane-dense (vol, n*C) vregs.
            y = (jnp.concatenate([acc[b * vol:(b + 1) * vol] for b in range(n)],
                                 axis=1)
                 if n > 1 else acc)                               # (vol, n*C)

            def lane_fold(v):        # (1, n*C) -> (1, C): sum over batches
                t = v[:, 0:cout]
                for b in range(1, n):
                    t = t + v[:, b * cout:(b + 1) * cout]
                return t

            def lane_tile(v):        # (1, C) -> (1, n*C)
                return jnp.concatenate([v] * n, axis=1) if n > 1 else v

            # Training-mode BatchNorm: two-pass (mean, then centred variance).
            inv_m = 1.0 / m
            mean = lane_fold(jnp.sum(y, axis=0, keepdims=True)) * inv_m
            cent = y - lane_tile(mean)
            var = lane_fold(jnp.sum(cent * cent, axis=0, keepdims=True)) * inv_m
            scale = g_ref[...] * lax.rsqrt(var + BN_EPS)
            y = jnp.maximum(cent * lane_tile(scale) + lane_tile(b_ref[...]),
                            0.0)                                  # ReLU

            # Separable MaxPool3d(k=3, s=2, p=1).  Row index of y is
            # (d*oh + h)*ow + w, so depth and height windows are contiguous
            # whole-tensor row slices + elementwise maxima; only the final
            # width window is a tiny sublane reduction.  Only valid taps are
            # used, which equals -inf padding.
            dsl = [y[d * oh * ow:(d + 1) * oh * ow] for d in range(od)]
            rows = []
            for zd in range(opd):
                lo, hi = _pool_bounds(zd, od)
                pd = _maxtree(dsl[lo:hi])                         # (oh*ow, n*C)
                hsl = [pd[h * ow:(h + 1) * ow] for h in range(oh)]
                for zh in range(oph):
                    lo, hi = _pool_bounds(zh, oh)
                    ph = _maxtree(hsl[lo:hi])                     # (ow, n*C)
                    for zw in range(opw):
                        lo, hi = _pool_bounds(zw, ow)
                        rows.append(jnp.max(ph[lo:hi], axis=0, keepdims=True))
            # Single bulk store of the pooled (opd*oph*opw, n*C) slab.
            o_ref[...] = jnp.concatenate(rows, axis=0)

    return kernel, (opd, oph, opw)


# ------------------------------- forward pass ------------------------------- #

def initial_conv_forward(x_ncdhw, params, *, tk=256):
    x = jnp.transpose(x_ncdhw, (0, 2, 3, 4, 1)).astype(jnp.float32)  # -> NDHWC
    n, dd, hh, ww, cin = x.shape
    ksz, st, pad = 7, 2, 1
    od = (dd + 2 * pad - ksz) // st + 1
    oh = (hh + 2 * pad - ksz) // st + 1
    ow = (ww + 2 * pad - ksz) // st + 1
    m = n * od * oh * ow

    # Patch (im2col) matrix via one fused XLA op (no 343-slice stack/reshape).
    # conv_general_dilated_patches feature ordering is channel-major:
    #   j = c*k^3 + (kd*k^2 + kh*k + kw)
    # TODO(synk): build patches in-kernel from the padded NDHWC input to remove
    # the HBM patch-matrix round trip entirely for large volumes.
    patches = lax.conv_general_dilated_patches(
        x, filter_shape=(ksz, ksz, ksz), window_strides=(st, st, st),
        padding=[(pad, pad)] * 3,
        dimension_numbers=("NDHWC", "DHWIO", "NDHWC"))
    kdim = cin * ksz ** 3
    patches = patches.reshape(m, kdim)
    # conv weight (kd,kh,kw,cin,cout) -> (cin,kd,kh,kw,cout) -> (kdim, cout)
    # to match the patch feature ordering above.
    w = jnp.transpose(params["conv_w"], (3, 0, 1, 2, 4)).reshape(kdim, -1)
    cout = w.shape[1]

    # Zero-pad K to a multiple of the K tile; feed the MXU bf16 operands
    # (f32 accumulation happens in-kernel).
    kp = pl.cdiv(kdim, tk) * tk
    patches = jnp.pad(patches, ((0, 0), (0, kp - kdim))).astype(jnp.bfloat16)
    w = jnp.pad(w, ((0, kp - kdim), (0, 0))).astype(jnp.bfloat16)

    kernel, (opd, oph, opw) = _make_fused_kernel(n, od, oh, ow, cout)
    out_shape = jax.ShapeDtypeStruct((opd * oph * opw, n * cout), jnp.float32)

    # Grid over K: the next patch/weight K-slab DMA is double-buffered behind
    # the current MXU step; BN/ReLU/pool run in the finalize step while the
    # whole feature map is still VMEM-resident.
    # TODO(synk): for large volumes, tile M with a two-phase BN (global-stat
    # accumulate, then normalize+pool) and mark the M axis "parallel" so
    # v7x's two TensorCores are used; size tiles for its 64 MiB VMEM.
    pooled = pl.pallas_call(
        kernel,
        out_shape=out_shape,
        grid=(kp // tk,),
        in_specs=[
            pl.BlockSpec((m, tk), lambda k: (0, k)),
            pl.BlockSpec((tk, cout), lambda k: (k, 0)),
            pl.BlockSpec((1, cout), lambda k: (0, 0)),
            pl.BlockSpec((1, cout), lambda k: (0, 0)),
        ],
        out_specs=pl.BlockSpec((opd * oph * opw, n * cout), lambda k: (0, 0)),
        scratch_shapes=[pltpu.VMEM((m, cout), jnp.float32)],
        compiler_params=pltpu.CompilerParams(
            dimension_semantics=("arbitrary",)),
    )(patches, w, params["gamma"], params["beta"])

    # (PD*PH*PW, N*C) -> (PD, PH, PW, N, C) -> NCDHW
    out = pooled.reshape(opd, oph, opw, n, cout)
    return jnp.transpose(out, (3, 4, 0, 1, 2))


# ------------------------------ reference (JAX) ----------------------------- #

def reference_forward(x_ncdhw, params, quantize_matmul_inputs=False):
    x = jnp.transpose(x_ncdhw, (0, 2, 3, 4, 1)).astype(jnp.float32)
    w = params["conv_w"].astype(jnp.float32)
    if quantize_matmul_inputs:
        # Mirror the kernel's bf16 MXU operands (f32 accumulation) exactly.
        x = x.astype(jnp.bfloat16).astype(jnp.float32)
        w = w.astype(jnp.bfloat16).astype(jnp.float32)
    conv = lax.conv_general_dilated(
        x, w, window_strides=(2, 2, 2), padding=[(1, 1)] * 3,
        dimension_numbers=("NDHWC", "DHWIO", "NDHWC"),
        precision=lax.Precision.HIGHEST)
    mean = conv.mean(axis=(0, 1, 2, 3))
    var = conv.var(axis=(0, 1, 2, 3))
    xn = (conv - mean) * lax.rsqrt(var + BN_EPS)
    r = jnp.maximum(xn * params["gamma"][0] + params["beta"][0], 0.0)
    pooled = lax.reduce_window(
        r, -jnp.inf, lax.max,
        window_dimensions=(1, 3, 3, 3, 1), window_strides=(1, 2, 2, 2, 1),
        padding=[(0, 0), (1, 1), (1, 1), (1, 1), (0, 0)])
    return jnp.transpose(pooled, (0, 4, 1, 2, 3))


# --------------------------------- params ----------------------------------- #

def init_params(key, n_input_channels=2, num_init_features=64, conv1_t_size=7):
    # The SE branch (fc1/fc2) is omitted: the torch forward discards its
    # output, so it does not affect the module's return value.
    k0, k1, k2 = jax.random.split(key, 3)
    cin, cout = n_input_channels, num_init_features
    return {
        # conv weight stored as (kD, kH, kW, Cin, Cout)  (DHWIO)
        "conv_w": 0.05 * jax.random.normal(
            k0, (conv1_t_size, conv1_t_size, conv1_t_size, cin, cout),
            jnp.float32),
        "gamma": 1.0 + 0.1 * jax.random.normal(k1, (1, cout), jnp.float32),
        "beta": 0.1 * jax.random.normal(k2, (1, cout), jnp.float32),
    }


if __name__ == "__main__":
    key = jax.random.PRNGKey(0)
    kx, kparam = jax.random.split(key)
    # NCDHW input, like the PyTorch module: batch=2, channels=2, spatial=16^3
    x = jax.random.normal(kx, (2, 2, 16, 16, 16), jnp.float32)
    params = init_params(kparam)

    out = jax.jit(initial_conv_forward)(x, params)
    out = jax.block_until_ready(out)
    assert out.shape == (2, 64, 3, 3, 3), out.shape

    # 1) Tight implementation check: reference fed the SAME bf16-quantized conv
    #    operands as the kernel's MXU (both f32-accumulated).  Verifies the
    #    matmul/BN/ReLU/pool plumbing to ~f32 rounding.
    ref_q = reference_forward(x, params, quantize_matmul_inputs=True)
    assert jnp.allclose(out, ref_q, atol=5e-4, rtol=5e-4), float(
        jnp.max(jnp.abs(out - ref_q)))

    # 2) Module-semantics check vs the full-f32 reference; the looser tolerance
    #    only reflects the intentional bf16 MXU operands (perf-review item),
    #    not kernel structure (structural bugs give O(0.1-1) errors).
    ref = reference_forward(x, params)
    assert jnp.allclose(out, ref, atol=2.5e-2, rtol=2.5e-2), float(
        jnp.max(jnp.abs(out - ref)))

    print("KERNEL_OK")
</pallas_src>

<mosaic_0001>
module attributes {stable_mosaic.version = 11 : i64} {
  func.func @kernel(%arg0: i32, %arg1: memref<432x256xbf16, #tpu.memory_space<vmem>>, %arg2: memref<256x64xbf16, #tpu.memory_space<vmem>>, %arg3: memref<1x64xf32, #tpu.memory_space<vmem>>, %arg4: memref<1x64xf32, #tpu.memory_space<vmem>>, %arg5: memref<27x128xf32, #tpu.memory_space<vmem>>, %arg6: memref<432x64xf32, #tpu.memory_space<vmem>>) attributes {dimension_semantics = [#tpu.dimension_semantics<arbitrary>], iteration_bounds = array<i64: 3>, scalar_prefetch = 0 : i64, scratch_operands = 1 : i64, tpu.core_type = #tpu.core_type<tc>, window_params = [{transform_indices = @transform_0, window_bounds = array<i64: 432, 256>}, {transform_indices = @transform_1, window_bounds = array<i64: 256, 64>}, {pipeline_mode = #tpu.pipeline_mode<synchronous>, transform_indices = @transform_2, window_bounds = array<i64: 1, 64>}, {pipeline_mode = #tpu.pipeline_mode<synchronous>, transform_indices = @transform_3, window_bounds = array<i64: 1, 64>}, {pipeline_mode = #tpu.pipeline_mode<synchronous>, transform_indices = @transform_4, window_bounds = array<i64: 27, 128>}]} {
    %c0_i32 = arith.constant 0 : i32
    %0 = arith.cmpi eq, %arg0, %c0_i32 : i32
    %1 = arith.extui %0 : i1 to i32
    %c0_i32_0 = arith.constant 0 : i32
    %2 = arith.cmpi ne, %1, %c0_i32_0 : i32
    scf.if %2 {
      %cst_9 = arith.constant 0.000000e+00 : f32
      %12 = vector.broadcast %cst_9 : f32 to vector<432x64xf32>
      %c0_10 = arith.constant 0 : index
      %c0_11 = arith.constant 0 : index
      %13 = vector.load %arg6[%c0_10, %c0_11] : memref<432x64xf32, #tpu.memory_space<vmem>>, vector<432x64xf32>
      tpu.vector_store %arg6[%c0_10, %c0_11], %12 {strides = array<i32>} : memref<432x64xf32, #tpu.memory_space<vmem>>, vector<432x64xf32>,
    } else {
    }
    %c0 = arith.constant 0 : index
    %c0_1 = arith.constant 0 : index
    %3 = vector.load %arg6[%c0, %c0_1] : memref<432x64xf32, #tpu.memory_space<vmem>>, vector<432x64xf32>
    %c0_2 = arith.constant 0 : index
    %c0_3 = arith.constant 0 : index
    %4 = vector.load %arg1[%c0_2, %c0_3] : memref<432x256xbf16, #tpu.memory_space<vmem>>, vector<432x256xbf16>
    %c0_4 = arith.constant 0 : index
    %c0_5 = arith.constant 0 : index
    %5 = vector.load %arg2[%c0_4, %c0_5] : memref<256x64xbf16, #tpu.memory_space<vmem>>, vector<256x64xbf16>
    %cst = arith.constant dense<0.000000e+00> : vector<432x64xf32>
    %6 = tpu.matmul %4, %5, %cst {dimension_numbers = #tpu.dot_dimension_numbers<[1], [0], [0], [1], [0, 0, 1, 1], [], []>} : vector<432x256xbf16>, vector<256x64xbf16>, vector<432x64xf32> -> vector<432x64xf32>
    %7 = arith.addf %3, %6 : vector<432x64xf32>
    %c0_6 = arith.constant 0 : index
    %c0_7 = arith.constant 0 : index
    %8 = vector.load %arg6[%c0_6, %c0_7] : memref<432x64xf32, #tpu.memory_space<vmem>>, vector<432x64xf32>
    tpu.vector_store %arg6[%c0_6, %c0_7], %7 {strides = array<i32>} : memref<432x64xf32, #tpu.memory_space<vmem>>, vector<432x64xf32>,
    %c2_i32 = arith.constant 2 : i32
    %9 = arith.cmpi eq, %arg0, %c2_i32 : i32
    %10 = arith.extui %9 : i1 to i32
    %c0_i32_8 = arith.constant 0 : i32
    %11 = arith.cmpi ne, %10, %c0_i32_8 : i32
    scf.if %11 {
      %c0_9 = arith.constant 0 : index
      %c0_10 = arith.constant 0 : index
      %12 = vector.load %arg6[%c0_9, %c0_10] : memref<432x64xf32, #tpu.memory_space<vmem>>, vector<432x64xf32>
      %13 = vector.extract_strided_slice %12 {offsets = [0, 0], sizes = [216, 64], strides = [1, 1]} : vector<432x64xf32> to vector<216x64xf32>
      %14 = vector.extract_strided_slice %12 {offsets = [216, 0], sizes = [216, 64], strides = [1, 1]} : vector<432x64xf32> to vector<216x64xf32>
      %15 = tpu.concatenate %13, %14 in 1 : vector<216x64xf32>, vector<216x64xf32> -> vector<216x128xf32>
      %cst_11 = arith.constant dense<0.000000e+00> : vector<128xf32>
      %16 = vector.multi_reduction <add>, %15, %cst_11 [0] : vector<216x128xf32> to vector<128xf32>
      %17 = vector.shape_cast %16 : vector<128xf32> to vector<1x128xf32>
      %18 = vector.extract_strided_slice %17 {offsets = [0, 0], sizes = [1, 64], strides = [1, 1]} : vector<1x128xf32> to vector<1x64xf32>
      %19 = vector.extract_strided_slice %17 {offsets = [0, 64], sizes = [1, 64], strides = [1, 1]} : vector<1x128xf32> to vector<1x64xf32>
      %20 = arith.addf %18, %19 : vector<1x64xf32>
      %cst_12 = arith.constant 0.00231481483 : f32
      %21 = vector.broadcast %cst_12 : f32 to vector<1x64xf32>
      %22 = arith.mulf %20, %21 : vector<1x64xf32>
      %23 = tpu.concatenate %22, %22 in 1 : vector<1x64xf32>, vector<1x64xf32> -> vector<1x128xf32>
      %24 = vector.broadcast %23 : vector<1x128xf32> to vector<216x128xf32>
      %25 = arith.subf %15, %24 : vector<216x128xf32>
      %26 = arith.mulf %25, %25 : vector<216x128xf32>
      %cst_13 = arith.constant dense<0.000000e+00> : vector<128xf32>
      %27 = vector.multi_reduction <add>, %26, %cst_13 [0] : vector<216x128xf32> to vector<128xf32>
      %28 = vector.shape_cast %27 : vector<128xf32> to vector<1x128xf32>
      %29 = vector.extract_strided_slice %28 {offsets = [0, 0], sizes = [1, 64], strides = [1, 1]} : vector<1x128xf32> to vector<1x64xf32>
      %30 = vector.extract_strided_slice %28 {offsets = [0, 64], sizes = [1, 64], strides = [1, 1]} : vector<1x128xf32> to vector<1x64xf32>
      %31 = arith.addf %29, %30 : vector<1x64xf32>
      %cst_14 = arith.constant 0.00231481483 : f32
      %32 = vector.broadcast %cst_14 : f32 to vector<1x64xf32>
      %33 = arith.mulf %31, %32 : vector<1x64xf32>
      %c0_15 = arith.constant 0 : index
      %c0_16 = arith.constant 0 : index
      %34 = vector.load %arg3[%c0_15, %c0_16] : memref<1x64xf32, #tpu.memory_space<vmem>>, vector<1x64xf32>
      %cst_17 = arith.constant 9.99999974E-6 : f32
      %35 = vector.broadcast %cst_17 : f32 to vector<1x64xf32>
      %36 = arith.addf %33, %35 : vector<1x64xf32>
      %37 = math.rsqrt %36 : vector<1x64xf32>
      %38 = arith.mulf %34, %37 : vector<1x64xf32>
      %39 = tpu.concatenate %38, %38 in 1 : vector<1x64xf32>, vector<1x64xf32> -> vector<1x128xf32>
      %40 = vector.broadcast %39 : vector<1x128xf32> to vector<216x128xf32>
      %41 = arith.mulf %25, %40 : vector<216x128xf32>
      %c0_18 = arith.constant 0 : index
      %c0_19 = arith.constant 0 : index
      %42 = vector.load %arg4[%c0_18, %c0_19] : memref<1x64xf32, #tpu.memory_space<vmem>>, vector<1x64xf32>
      %43 = tpu.concatenate %42, %42 in 1 : vector<1x64xf32>, vector<1x64xf32> -> vector<1x128xf32>
      %44 = vector.broadcast %43 : vector<1x128xf32> to vector<216x128xf32>
      %45 = arith.addf %41, %44 : vector<216x128xf32>
      %cst_20 = arith.constant 0.000000e+00 : f32
      %46 = vector.broadcast %cst_20 : f32 to vector<216x128xf32>
      %47 = arith.maximumf %45, %46 : vector<216x128xf32>
      %48 = vector.extract_strided_slice %47 {offsets = [0, 0], sizes = [36, 128], strides = [1, 1]} : vector<216x128xf32> to vector<36x128xf32>
      %49 = vector.extract_strided_slice %47 {offsets = [36, 0], sizes = [36, 128], strides = [1, 1]} : vector<216x128xf32> to vector<36x128xf32>
      %50 = vector.extract_strided_slice %47 {offsets = [72, 0], sizes = [36, 128], strides = [1, 1]} : vector<216x128xf32> to vector<36x128xf32>
      %51 = vector.extract_strided_slice %47 {offsets = [108, 0], sizes = [36, 128], strides = [1, 1]} : vector<216x128xf32> to vector<36x128xf32>
      %52 = vector.extract_strided_slice %47 {offsets = [144, 0], sizes = [36, 128], strides = [1, 1]} : vector<216x128xf32> to vector<36x128xf32>
      %53 = vector.extract_strided_slice %47 {offsets = [180, 0], sizes = [36, 128], strides = [1, 1]} : vector<216x128xf32> to vector<36x128xf32>
      %54 = arith.maximumf %48, %49 : vector<36x128xf32>
      %55 = vector.extract_strided_slice %54 {offsets = [0, 0], sizes = [6, 128], strides = [1, 1]} : vector<36x128xf32> to vector<6x128xf32>
      %56 = vector.extract_strided_slice %54 {offsets = [6, 0], sizes = [6, 128], strides = [1, 1]} : vector<36x128xf32> to vector<6x128xf32>
      %57 = vector.extract_strided_slice %54 {offsets = [12, 0], sizes = [6, 128], strides = [1, 1]} : vector<36x128xf32> to vector<6x128xf32>
      %58 = vector.extract_strided_slice %54 {offsets = [18, 0], sizes = [6, 128], strides = [1, 1]} : vector<36x128xf32> to vector<6x128xf32>
      %59 = vector.extract_strided_slice %54 {offsets = [24, 0], sizes = [6, 128], strides = [1, 1]} : vector<36x128xf32> to vector<6x128xf32>
      %60 = vector.extract_strided_slice %54 {offsets = [30, 0], sizes = [6, 128], strides = [1, 1]} : vector<36x128xf32> to vector<6x128xf32>
      %61 = arith.maximumf %55, %56 : vector<6x128xf32>
      %62 = vector.extract_strided_slice %61 {offsets = [0, 0], sizes = [2, 128], strides = [1, 1]} : vector<6x128xf32> to vector<2x128xf32>
      %cst_21 = arith.constant dense<0xFF800000> : vector<128xf32>
      %63 = vector.multi_reduction <maximumf>, %62, %cst_21 [0] : vector<2x128xf32> to vector<128xf32>
      %64 = vector.shape_cast %63 : vector<128xf32> to vector<1x128xf32>
      %65 = vector.extract_strided_slice %61 {offsets = [1, 0], sizes = [3, 128], strides = [1, 1]} : vector<6x128xf32> to vector<3x128xf32>
      %cst_22 = arith.constant dense<0xFF800000> : vector<128xf32>
      %66 = vector.multi_reduction <maximumf>, %65, %cst_22 [0] : vector<3x128xf32> to vector<128xf32>
      %67 = vector.shape_cast %66 : vector<128xf32> to vector<1x128xf32>
      %68 = vector.extract_strided_slice %61 {offsets = [3, 0], sizes = [3, 128], strides = [1, 1]} : vector<6x128xf32> to vector<3x128xf32>
      %cst_23 = arith.constant dense<0xFF800000> : vector<128xf32>
      %69 = vector.multi_reduction <maximumf>, %68, %cst_23 [0] : vector<3x128xf32> to vector<128xf32>
      %70 = vector.shape_cast %69 : vector<128xf32> to vector<1x128xf32>
      %71 = arith.maximumf %56, %57 : vector<6x128xf32>
      %72 = arith.maximumf %71, %58 : vector<6x128xf32>
      %73 = vector.extract_strided_slice %72 {offsets = [0, 0], sizes = [2, 128], strides = [1, 1]} : vector<6x128xf32> to vector<2x128xf32>
      %cst_24 = arith.constant dense<0xFF800000> : vector<128xf32>
      %74 = vector.multi_reduction <maximumf>, %73, %cst_24 [0] : vector<2x128xf32> to vector<128xf32>
      %75 = vector.shape_cast %74 : vector<128xf32> to vector<1x128xf32>
      %76 = vector.extract_strided_slice %72 {offsets = [1, 0], sizes = [3, 128], strides = [1, 1]} : vector<6x128xf32> to vector<3x128xf32>
      %cst_25 = arith.constant dense<0xFF800000> : vector<128xf32>
      %77 = vector.multi_reduction <maximumf>, %76, %cst_25 [0] : vector<3x128xf32> to vector<128xf32>
      %78 = vector.shape_cast %77 : vector<128xf32> to vector<1x128xf32>
      %79 = vector.extract_strided_slice %72 {offsets = [3, 0], sizes = [3, 128], strides = [1, 1]} : vector<6x128xf32> to vector<3x128xf32>
      %cst_26 = arith.constant dense<0xFF800000> : vector<128xf32>
      %80 = vector.multi_reduction <maximumf>, %79, %cst_26 [0] : vector<3x128xf32> to vector<128xf32>
      %81 = vector.shape_cast %80 : vector<128xf32> to vector<1x128xf32>
      %82 = arith.maximumf %58, %59 : vector<6x128xf32>
      %83 = arith.maximumf %82, %60 : vector<6x128xf32>
      %84 = vector.extract_strided_slice %83 {offsets = [0, 0], sizes = [2, 128], strides = [1, 1]} : vector<6x128xf32> to vector<2x128xf32>
      %cst_27 = arith.constant dense<0xFF800000> : vector<128xf32>
      %85 = vector.multi_reduction <maximumf>, %84, %cst_27 [0] : vector<2x128xf32> to vector<128xf32>
      %86 = vector.shape_cast %85 : vector<128xf32> to vector<1x128xf32>
      %87 = vector.extract_strided_slice %83 {offsets = [1, 0], sizes = [3, 128], strides = [1, 1]} : vector<6x128xf32> to vector<3x128xf32>
      %cst_28 = arith.constant dense<0xFF800000> : vector<128xf32>
      %88 = vector.multi_reduction <maximumf>, %87, %cst_28 [0] : vector<3x128xf32> to vector<128xf32>
      %89 = vector.shape_cast %88 : vector<128xf32> to vector<1x128xf32>
      %90 = vector.extract_strided_slice %83 {offsets = [3, 0], sizes = [3, 128], strides = [1, 1]} : vector<6x128xf32> to vector<3x128xf32>
      %cst_29 = arith.constant dense<0xFF800000> : vector<128xf32>
      %91 = vector.multi_reduction <maximumf>, %90, %cst_29 [0] : vector<3x128xf32> to vector<128xf32>
      %92 = vector.shape_cast %91 : vector<128xf32> to vector<1x128xf32>
      %93 = arith.maximumf %49, %50 : vector<36x128xf32>
      %94 = arith.maximumf %93, %51 : vector<36x128xf32>
      %95 = vector.extract_strided_slice %94 {offsets = [0, 0], sizes = [6, 128], strides = [1, 1]} : vector<36x128xf32> to vector<6x128xf32>
      %96 = vector.extract_strided_slice %94 {offsets = [6, 0], sizes = [6, 128], strides = [1, 1]} : vector<36x128xf32> to vector<6x128xf32>
      %97 = vector.extract_strided_slice %94 {offsets = [12, 0], sizes = [6, 128], strides = [1, 1]} : vector<36x128xf32> to vector<6x128xf32>
      %98 = vector.extract_strided_slice %94 {offsets = [18, 0], sizes = [6, 128], strides = [1, 1]} : vector<36x128xf32> to vector<6x128xf32>
      %99 = vector.extract_strided_slice %94 {offsets = [24, 0], sizes = [6, 128], strides = [1, 1]} : vector<36x128xf32> to vector<6x128xf32>
      %100 = vector.extract_strided_slice %94 {offsets = [30, 0], sizes = [6, 128], strides = [1, 1]} : vector<36x128xf32> to vector<6x128xf32>
      %101 = arith.maximumf %95, %96 : vector<6x128xf32>
      %102 = vector.extract_strided_slice %101 {offsets = [0, 0], sizes = [2, 128], strides = [1, 1]} : vector<6x128xf32> to vector<2x128xf32>
      %cst_30 = arith.constant dense<0xFF800000> : vector<128xf32>
      %103 = vector.multi_reduction <maximumf>, %102, %cst_30 [0] : vector<2x128xf32> to vector<128xf32>
      %104 = vector.shape_cast %103 : vector<128xf32> to vector<1x128xf32>
      %105 = vector.extract_strided_slice %101 {offsets = [1, 0], sizes = [3, 128], strides = [1, 1]} : vector<6x128xf32> to vector<3x128xf32>
      %cst_31 = arith.constant dense<0xFF800000> : vector<128xf32>
      %106 = vector.multi_reduction <maximumf>, %105, %cst_31 [0] : vector<3x128xf32> to vector<128xf32>
      %107 = vector.shape_cast %106 : vector<128xf32> to vector<1x128xf32>
      %108 = vector.extract_strided_slice %101 {offsets = [3, 0], sizes = [3, 128], strides = [1, 1]} : vector<6x128xf32> to vector<3x128xf32>
      %cst_32 = arith.constant dense<0xFF800000> : vector<128xf32>
      %109 = vector.multi_reduction <maximumf>, %108, %cst_32 [0] : vector<3x128xf32> to vector<128xf32>
      %110 = vector.shape_cast %109 : vector<128xf32> to vector<1x128xf32>
      %111 = arith.maximumf %96, %97 : vector<6x128xf32>
      %112 = arith.maximumf %111, %98 : vector<6x128xf32>
      %113 = vector.extract_strided_slice %112 {offsets = [0, 0], sizes = [2, 128], strides = [1, 1]} : vector<6x128xf32> to vector<2x128xf32>
      %cst_33 = arith.constant dense<0xFF800000> : vector<128xf32>
      %114 = vector.multi_reduction <maximumf>, %113, %cst_33 [0] : vector<2x128xf32> to vector<128xf32>
      %115 = vector.shape_cast %114 : vector<128xf32> to vector<1x128xf32>
      %116 = vector.extract_strided_slice %112 {offsets = [1, 0], sizes = [3, 128], strides = [1, 1]} : vector<6x128xf32> to vector<3x128xf32>
      %cst_34 = arith.constant dense<0xFF800000> : vector<128xf32>
      %117 = vector.multi_reduction <maximumf>, %116, %cst_34 [0] : vector<3x128xf32> to vector<128xf32>
      %118 = vector.shape_cast %117 : vector<128xf32> to vector<1x128xf32>
      %119 = vector.extract_strided_slice %112 {offsets = [3, 0], sizes = [3, 128], strides = [1, 1]} : vector<6x128xf32> to vector<3x128xf32>
      %cst_35 = arith.constant dense<0xFF800000> : vector<128xf32>
      %120 = vector.multi_reduction <maximumf>, %119, %cst_35 [0] : vector<3x128xf32> to vector<128xf32>
      %121 = vector.shape_cast %120 : vector<128xf32> to vector<1x128xf32>
      %122 = arith.maximumf %98, %99 : vector<6x128xf32>
      %123 = arith.maximumf %122, %100 : vector<6x128xf32>
      %124 = vector.extract_strided_slice %123 {offsets = [0, 0], sizes = [2, 128], strides = [1, 1]} : vector<6x128xf32> to vector<2x128xf32>
      %cst_36 = arith.constant dense<0xFF800000> : vector<128xf32>
      %125 = vector.multi_reduction <maximumf>, %124, %cst_36 [0] : vector<2x128xf32> to vector<128xf32>
      %126 = vector.shape_cast %125 : vector<128xf32> to vector<1x128xf32>
      %127 = vector.extract_strided_slice %123 {offsets = [1, 0], sizes = [3, 128], strides = [1, 1]} : vector<6x128xf32> to vector<3x128xf32>
      %cst_37 = arith.constant dense<0xFF800000> : vector<128xf32>
      %128 = vector.multi_reduction <maximumf>, %127, %cst_37 [0] : vector<3x128xf32> to vector<128xf32>
      %129 = vector.shape_cast %128 : vector<128xf32> to vector<1x128xf32>
      %130 = vector.extract_strided_slice %123 {offsets = [3, 0], sizes = [3, 128], strides = [1, 1]} : vector<6x128xf32> to vector<3x128xf32>
      %cst_38 = arith.constant dense<0xFF800000> : vector<128xf32>
      %131 = vector.multi_reduction <maximumf>, %130, %cst_38 [0] : vector<3x128xf32> to vector<128xf32>
      %132 = vector.shape_cast %131 : vector<128xf32> to vector<1x128xf32>
      %133 = arith.maximumf %51, %52 : vector<36x128xf32>
      %134 = arith.maximumf %133, %53 : vector<36x128xf32>
      %135 = vector.extract_strided_slice %134 {offsets = [0, 0], sizes = [6, 128], strides = [1, 1]} : vector<36x128xf32> to vector<6x128xf32>
      %136 = vector.extract_strided_slice %134 {offsets = [6, 0], sizes = [6, 128], strides = [1, 1]} : vector<36x128xf32> to vector<6x128xf32>
      %137 = vector.extract_strided_slice %134 {offsets = [12, 0], sizes = [6, 128], strides = [1, 1]} : vector<36x128xf32> to vector<6x128xf32>
      %138 = vector.extract_strided_slice %134 {offsets = [18, 0], sizes = [6, 128], strides = [1, 1]} : vector<36x128xf32> to vector<6x128xf32>
      %139 = vector.extract_strided_slice %134 {offsets = [24, 0], sizes = [6, 128], strides = [1, 1]} : vector<36x128xf32> to vector<6x128xf32>
      %140 = vector.extract_strided_slice %134 {offsets = [30, 0], sizes = [6, 128], strides = [1, 1]} : vector<36x128xf32> to vector<6x128xf32>
      %141 = arith.maximumf %135, %136 : vector<6x128xf32>
      %142 = vector.extract_strided_slice %141 {offsets = [0, 0], sizes = [2, 128], strides = [1, 1]} : vector<6x128xf32> to vector<2x128xf32>
      %cst_39 = arith.constant dense<0xFF800000> : vector<128xf32>
      %143 = vector.multi_reduction <maximumf>, %142, %cst_39 [0] : vector<2x128xf32> to vector<128xf32>
      %144 = vector.shape_cast %143 : vector<128xf32> to vector<1x128xf32>
      %145 = vector.extract_strided_slice %141 {offsets = [1, 0], sizes = [3, 128], strides = [1, 1]} : vector<6x128xf32> to vector<3x128xf32>
      %cst_40 = arith.constant dense<0xFF800000> : vector<128xf32>
      %146 = vector.multi_reduction <maximumf>, %145, %cst_40 [0] : vector<3x128xf32> to vector<128xf32>
      %147 = vector.shape_cast %146 : vector<128xf32> to vector<1x128xf32>
      %148 = vector.extract_strided_slice %141 {offsets = [3, 0], sizes = [3, 128], strides = [1, 1]} : vector<6x128xf32> to vector<3x128xf32>
      %cst_41 = arith.constant dense<0xFF800000> : vector<128xf32>
      %149 = vector.multi_reduction <maximumf>, %148, %cst_41 [0] : vector<3x128xf32> to vector<128xf32>
      %150 = vector.shape_cast %149 : vector<128xf32> to vector<1x128xf32>
      %151 = arith.maximumf %136, %137 : vector<6x128xf32>
      %152 = arith.maximumf %151, %138 : vector<6x128xf32>
      %153 = vector.extract_strided_slice %152 {offsets = [0, 0], sizes = [2, 128], strides = [1, 1]} : vector<6x128xf32> to vector<2x128xf32>
      %cst_42 = arith.constant dense<0xFF800000> : vector<128xf32>
      %154 = vector.multi_reduction <maximumf>, %153, %cst_42 [0] : vector<2x128xf32> to vector<128xf32>
      %155 = vector.shape_cast %154 : vector<128xf32> to vector<1x128xf32>
      %156 = vector.extract_strided_slice %152 {offsets = [1, 0], sizes = [3, 128], strides = [1, 1]} : vector<6x128xf32> to vector<3x128xf32>
      %cst_43 = arith.constant dense<0xFF800000> : vector<128xf32>
      %157 = vector.multi_reduction <maximumf>, %156, %cst_43 [0] : vector<3x128xf32> to vector<128xf32>
      %158 = vector.shape_cast %157 : vector<128xf32> to vector<1x128xf32>
      %159 = vector.extract_strided_slice %152 {offsets = [3, 0], sizes = [3, 128], strides = [1, 1]} : vector<6x128xf32> to vector<3x128xf32>
      %cst_44 = arith.constant dense<0xFF800000> : vector<128xf32>
      %160 = vector.multi_reduction <maximumf>, %159, %cst_44 [0] : vector<3x128xf32> to vector<128xf32>
      %161 = vector.shape_cast %160 : vector<128xf32> to vector<1x128xf32>
      %162 = arith.maximumf %138, %139 : vector<6x128xf32>
      %163 = arith.maximumf %162, %140 : vector<6x128xf32>
      %164 = vector.extract_strided_slice %163 {offsets = [0, 0], sizes = [2, 128], strides = [1, 1]} : vector<6x128xf32> to vector<2x128xf32>
      %cst_45 = arith.constant dense<0xFF800000> : vector<128xf32>
      %165 = vector.multi_reduction <maximumf>, %164, %cst_45 [0] : vector<2x128xf32> to vector<128xf32>
      %166 = vector.shape_cast %165 : vector<128xf32> to vector<1x128xf32>
      %167 = vector.extract_strided_slice %163 {offsets = [1, 0], sizes = [3, 128], strides = [1, 1]} : vector<6x128xf32> to vector<3x128xf32>
      %cst_46 = arith.constant dense<0xFF800000> : vector<128xf32>
      %168 = vector.multi_reduction <maximumf>, %167, %cst_46 [0] : vector<3x128xf32> to vector<128xf32>
      %169 = vector.shape_cast %168 : vector<128xf32> to vector<1x128xf32>
      %170 = vector.extract_strided_slice %163 {offsets = [3, 0], sizes = [3, 128], strides = [1, 1]} : vector<6x128xf32> to vector<3x128xf32>
      %cst_47 = arith.constant dense<0xFF800000> : vector<128xf32>
      %171 = vector.multi_reduction <maximumf>, %170, %cst_47 [0] : vector<3x128xf32> to vector<128xf32>
      %172 = vector.shape_cast %171 : vector<128xf32> to vector<1x128xf32>
      %173 = tpu.concatenate %64, %67, %70, %75, %78, %81, %86, %89, %92, %104, %107, %110, %115, %118, %121, %126 in 0 : vector<1x128xf32>, vector<1x128xf32>, vector<1x128xf32>, vector<1x128xf32>, vector<1x128xf32>, vector<1x128xf32>, vector<1x128xf32>, vector<1x128xf32>, vector<1x128xf32>, vector<1x128xf32>, vector<1x128xf32>, vector<1x128xf32>, vector<1x128xf32>, vector<1x128xf32>, vector<1x128xf32>, vector<1x128xf32> -> vector<16x128xf32>
      %174 = tpu.concatenate %129, %132, %144, %147, %150, %155, %158, %161, %166, %169, %172 in 0 : vector<1x128xf32>, vector<1x128xf32>, vector<1x128xf32>, vector<1x128xf32>, vector<1x128xf32>, vector<1x128xf32>, vector<1x128xf32>, vector<1x128xf32>, vector<1x128xf32>, vector<1x128xf32>, vector<1x128xf32> -> vector<11x128xf32>
      %175 = tpu.concatenate %173, %174 in 0 : vector<16x128xf32>, vector<11x128xf32> -> vector<27x128xf32>
      %c0_48 = arith.constant 0 : index
      %c0_49 = arith.constant 0 : index
      %176 = vector.load %arg5[%c0_48, %c0_49] : memref<27x128xf32, #tpu.memory_space<vmem>>, vector<27x128xf32>
      tpu.vector_store %arg5[%c0_48, %c0_49], %175 {strides = array<i32>} : memref<27x128xf32, #tpu.memory_space<vmem>>, vector<27x128xf32>,
    } else {
    }
    return
  }
  func.func @transform_0(%arg0: i32) -> (i32, i32) {
    %c0_i32 = arith.constant 0 : i32
    %c0_i32_0 = arith.constant 0 : i32
    return %c0_i32, %arg0 : i32, i32
  }
  func.func @transform_1(%arg0: i32) -> (i32, i32) {
    %c0_i32 = arith.constant 0 : i32
    %c0_i32_0 = arith.constant 0 : i32
    return %arg0, %c0_i32 : i32, i32
  }
  func.func @transform_2(%arg0: i32) -> (i32, i32) {
    %c0_i32 = arith.constant 0 : i32
    %c0_i32_0 = arith.constant 0 : i32
    %c0_i32_1 = arith.constant 0 : i32
    return %c0_i32, %c0_i32_0 : i32, i32
  }
  func.func @transform_3(%arg0: i32) -> (i32, i32) {
    %c0_i32 = arith.constant 0 : i32
    %c0_i32_0 = arith.constant 0 : i32
    %c0_i32_1 = arith.constant 0 : i32
    return %c0_i32, %c0_i32_0 : i32, i32
  }
  func.func @transform_4(%arg0: i32) -> (i32, i32) {
    %c0_i32 = arith.constant 0 : i32
    %c0_i32_0 = arith.constant 0 : i32
    %c0_i32_1 = arith.constant 0 : i32
    return %c0_i32, %c0_i32_0 : i32, i32
  }
}

</mosaic_0001>

<llo_original>
// kernel: initial_conv_forward.1
$region0: #{initial_conv_forward.1}
  #allocation0 [shape = 'u32[]', space=smem, size = 0x4, offset = 0x4, fixed_abs, tag = 'smem constant byte address 0x4 - core index']
  #allocation1 [shape = 'u32[144,128]{1,0:T(1,128)}', space=vmem, size = 0x12000, scoped, tag = 'internal scratch']
  #allocation2 [shape = 'f32[432,64]{1,0:T(8,128)}', space=vmem, size = 0x36000, scoped, tag = 'scratch operand']
  %s0 = inlined_call_operand.vmem [shape: bf16[432,768], index: 0, kind: input, shape index: {}]
  %s1 = inlined_call_operand.vmem [shape: bf16[768,64], index: 1, kind: input, shape index: {}]
  %s2 = inlined_call_operand.vmem [shape: f32[1,64], index: 2, kind: input, shape index: {}]
  %s3 = inlined_call_operand.vmem [shape: f32[1,64], index: 3, kind: input, shape index: {}]
  %s4 = inlined_call_operand.vmem [shape: f32[27,128], index: 4, kind: output, shape index: {}]
  %s5 = sld [smem:[#allocation0]]
  $region95: #{initial_conv_forward.1} parent=0
    _
  %s7 = ssub.s32 1, %s5
  %s8 = scalar_select 0, %s7, %s5
  $region1: #{initial_conv_forward.1} parent=0
    #allocation3 [shape = 'u8[442368]{0}', space=vmem, size = 0x6c000, scoped, tag = 'input window, operand 0']
    loop: start=0, step=1, limit=5
    $region2: #{initial_conv_forward.1} parent=1 // loop_pre_header
      _
    $region3: #{initial_conv_forward.1} parent=1 // loop_header
      %s10 = sphi 0, %s14
      %p11 = scmp.ge.s32.totalorder %s10, 5
      %s20 = sphi 0, %s22
      %s23 = sphi 0, %s20
      %s24 = sphi 0, %s23
      %s40 = sphi 0, %s24
      %s46 = sphi 0, %s48
      %s49 = sphi 0, %s46
      %s50 = sphi 0, %s49
      %s66 = sphi 0, %s50
      %s70 = sphi 0, %s70
      %s72 = sphi 0, %s70
      %s73 = sphi 0, %s72
      %s87 = sphi 0, %s73
      %s91 = sphi 0, %s91
      %s93 = sphi 0, %s91
      %s94 = sphi 0, %s93
      %s108 = sphi 0, %s94
      %s112 = sphi 0, %s112
      %s114 = sphi 0, %s112
      %s115 = sphi 0, %s114
      %s129 = sphi 0, %s115
    $region4: #{initial_conv_forward.1} parent=1 // loop_header_branch
      %13 = sbr.rel (%p11) target = $region8
    $region5: #{initial_conv_forward.1} parent=1 // loop_body
      %s15 = ssub.s32 %s10, 1
      %s16 = ssub.s32 %s10, 2
      %s17 = sadd.s32 %s10, 1
      %s18 = ssub.s32 %s10, %s17
      %p19 = scmp.eq.s32.totalorder %s18, 0
      %s21 = sadd.s32 %s20, 1
      %s22 = scalar_select %p19, %s20, %s21
      %p25 = pneg %p19
      %p26 = scmp.eq.s32.totalorder %s10, 2
      %p27 = por %p25, %p26
      %p28 = scmp.ne.s32.totalorder %s20, %s23
      %p29 = scmp.eq.s32.totalorder %s10, 0
      %p30 = por %p28, %p29
      %p31 = scmp.ne.s32.totalorder %s20, %s23
      %p32 = scmp.eq.s32.totalorder %s15, 2
      %p33 = por %p31, %p32
      %p34 = scmp.ne.s32.totalorder %s23, %s24
      %p35 = scmp.eq.s32.totalorder %s15, 0
      %p36 = por %p34, %p35
      %p37 = scmp.ne.s32.totalorder %s23, %s24
      %p38 = scmp.eq.s32.totalorder %s16, 2
      %p39 = por %p37, %p38
      %p41 = scmp.ne.s32.totalorder %s24, %s40
      %p42 = scmp.eq.s32.totalorder %s16, 0
      %p43 = por %p41, %p42
      %s44 = ssub.s32 %s10, %s17
      %p45 = scmp.eq.s32.totalorder %s44, 0
      %s47 = sadd.s32 %s46, 1
      %s48 = scalar_select %p45, %s46, %s47
      %p51 = pneg %p45
      %p52 = scmp.eq.s32.totalorder %s10, 2
      %p53 = por %p51, %p52
      %p54 = scmp.ne.s32.totalorder %s46, %s49
      %p55 = scmp.eq.s32.totalorder %s10, 0
      %p56 = por %p54, %p55
      %p57 = scmp.ne.s32.totalorder %s46, %s49
      %p58 = scmp.eq.s32.totalorder %s15, 2
      %p59 = por %p57, %p58
      %p60 = scmp.ne.s32.totalorder %s49, %s50
      %p61 = scmp.eq.s32.totalorder %s15, 0
      %p62 = por %p60, %p61
      %p63 = scmp.ne.s32.totalorder %s49, %s50
      %p64 = scmp.eq.s32.totalorder %s16, 2
      %p65 = por %p63, %p64
      %p67 = scmp.ne.s32.totalorder %s50, %s66
      %p68 = scmp.eq.s32.totalorder %s16, 0
      %p69 = por %p67, %p68
      %s71 = sadd.s32 %s70, 1
      %p74 = scmp.eq.s32.totalorder %s10, 2
      %p75 = scmp.ne.s32.totalorder %s70, %s72
      %p76 = scmp.eq.s32.totalorder %s10, 0
      %p77 = por %p75, %p76
      %p78 = scmp.ne.s32.totalorder %s70, %s72
      %p79 = scmp.eq.s32.totalorder %s15, 2
      %p80 = por %p78, %p79
      %p81 = scmp.ne.s32.totalorder %s72, %s73
      %p82 = scmp.eq.s32.totalorder %s15, 0
      %p83 = por %p81, %p82
      %p84 = scmp.ne.s32.totalorder %s72, %s73
      %p85 = scmp.eq.s32.totalorder %s16, 2
      %p86 = por %p84, %p85
      %p88 = scmp.ne.s32.totalorder %s73, %s87
      %p89 = scmp.eq.s32.totalorder %s16, 0
      %p90 = por %p88, %p89
      %s92 = sadd.s32 %s91, 1
      %p95 = scmp.eq.s32.totalorder %s10, 2
      %p96 = scmp.ne.s32.totalorder %s91, %s93
      %p97 = scmp.eq.s32.totalorder %s10, 0
      %p98 = por %p96, %p97
      %p99 = scmp.ne.s32.totalorder %s91, %s93
      %p100 = scmp.eq.s32.totalorder %s15, 2
      %p101 = por %p99, %p100
      %p102 = scmp.ne.s32.totalorder %s93, %s94
      %p103 = scmp.eq.s32.totalorder %s15, 0
      %p104 = por %p102, %p103
      %p105 = scmp.ne.s32.totalorder %s93, %s94
      %p106 = scmp.eq.s32.totalorder %s16, 2
      %p107 = por %p105, %p106
      %p109 = scmp.ne.s32.totalorder %s94, %s108
      %p110 = scmp.eq.s32.totalorder %s16, 0
      %p111 = por %p109, %p110
      %s113 = sadd.s32 %s112, 1
      %p116 = scmp.eq.s32.totalorder %s10, 2
      %p117 = scmp.ne.s32.totalorder %s112, %s114
      %p118 = scmp.eq.s32.totalorder %s10, 0
      %p119 = por %p117, %p118
      %p120 = scmp.ne.s32.totalorder %s112, %s114
      %p121 = scmp.eq.s32.totalorder %s15, 2
      %p122 = por %p120, %p121
      %p123 = scmp.ne.s32.totalorder %s114, %s115
      %p124 = scmp.eq.s32.totalorder %s15, 0
      %p125 = por %p123, %p124
      %p126 = scmp.ne.s32.totalorder %s114, %s115
      %p127 = scmp.eq.s32.totalorder %s16, 2
      %p128 = por %p126, %p127
      %p130 = scmp.ne.s32.totalorder %s115, %s129
      %p131 = scmp.eq.s32.totalorder %s16, 0
      %p132 = por %p130, %p131
      %p133 = scmp.le.s32.totalorder 1, %s10
      %p134 = scmp.lt.s32.totalorder %s10, 4
      %p135 = pnand %p133, %p134
      %p136 = pneg %p135
      // Predicated region
      $region9: #{initial_conv_forward.1} parent=5 // pred_check
        _
      $region10: #{initial_conv_forward.1} parent=5 // pred_check_branch
        %138 = sbr.rel (%p135) target = $region12
      $region11: #{initial_conv_forward.1} parent=5 // pred_region
        %s139 = ssub.s32 %s10, 1
        // Predicated region
        $region13: #{initial_conv_forward.1} parent=11 // pred_check
          %p140 = pneg %p83
        $region14: #{initial_conv_forward.1} parent=11 // pred_check_branch
          %142 = sbr.rel (%p140) target = $region16
        $region15: #{initial_conv_forward.1} parent=11 // pred_region
          _
        $region16: #{initial_conv_forward.1} parent=11 // pred_fallthru
          _
        // Predicated region
        $region17: #{initial_conv_forward.1} parent=11 // pred_check
          %p143 = pneg %p104
        $region18: #{initial_conv_forward.1} parent=11 // pred_check_branch
          %145 = sbr.rel (%p143) target = $region20
        $region19: #{initial_conv_forward.1} parent=11 // pred_region
          _
        $region20: #{initial_conv_forward.1} parent=11 // pred_fallthru
          _
      $region12: #{initial_conv_forward.1} parent=5 // pred_fallthru
        _
      %p146 = scmp.lt.s32.totalorder %s10, 3
      // Predicated region
      $region21: #{initial_conv_forward.1} parent=5 // pred_check
        %p147 = pneg %p146
      $region22: #{initial_conv_forward.1} parent=5 // pred_check_branch
        %149 = sbr.rel (%p147) target = $region24
      $region23: #{initial_conv_forward.1} parent=5 // pred_region
        // Predicated region
        $region25: #{initial_conv_forward.1} parent=23 // pred_check
          %p150 = pneg %p30
        $region26: #{initial_conv_forward.1} parent=23 // pred_check_branch
          %152 = sbr.rel (%p150) target = $region28
        $region27: #{initial_conv_forward.1} parent=23 // pred_region
          %s153 = sand.u32 %s20, 1
          %s154 = sand.u32 %s20, 1
          %s155 = smul.addr %s154, 432
          %s156 = scalar_lea.vmem [#allocation3], %s155
          %s157 = smul.u32 2, %s10
          %s158 = smul.addr %s157, 4
          %s159 = scalar_lea.vmem %s0, %s158
          // Predicated region
          $region29: #{initial_conv_forward.1} parent=27 // pred_check
            _
          $region30: #{initial_conv_forward.1} parent=27 // pred_check_branch
            %161 = sbr.rel (0) target = $region32
          $region31: #{initial_conv_forward.1} parent=27 // pred_region
            // Predicated region
            $region33: #{initial_conv_forward.1} parent=31 // pred_check
              _
            $region34: #{initial_conv_forward.1} parent=31 // pred_check_branch
              %163 = sbr.rel (0) target = $region36
            $region35: #{initial_conv_forward.1} parent=31 // pred_region
              // Predicated region
              $region48: #{initial_conv_forward.1} parent=35 // pred_check
                _
              $region49: #{initial_conv_forward.1} parent=35 // pred_check_branch
                %284 = sbr.rel (0) target = $region51
              $region50: #{initial_conv_forward.1} parent=35 // pred_region
                loop: start=0, step=1, limit=1
                $region52: #{initial_conv_forward.1} parent=50 // loop_pre_header
                  _
                $region53: #{initial_conv_forward.1} parent=50 // loop_header
                  %s286 = sphi 0, %s290
                  %p287 = scmp.ge.s32.totalorder %s286, 1
                  %s291 = sphi %s159, %s159
                  %s292 = sphi %s156, %s156
                $region54: #{initial_conv_forward.1} parent=50 // loop_header_branch
                  %289 = sbr.rel (%p287) target = $region58
                $region55: #{initial_conv_forward.1} parent=50 // loop_body
                  %v293 = vld [vmem:[%s291] sm:$0xff]
                  %294 = vst [vmem:[%s292] sm:$0xff] %v293
                  %v295 = vld [vmem:[%s291 + $0x18] sm:$0xff]
                  %296 = vst [vmem:[%s292 + $0x8] sm:$0xff] %v295
                  %v297 = vld [vmem:[%s291 + $0x30] sm:$0xff]
                  %298 = vst [vmem:[%s292 + $0x10] sm:$0xff] %v297
                  %v299 = vld [vmem:[%s291 + $0x48] sm:$0xff]
                  %300 = vst [vmem:[%s292 + $0x18] sm:$0xff] %v299
                  %v301 = vld [vmem:[%s291 + $0x60] sm:$0xff]
                  %302 = vst [vmem:[%s292 + $0x20] sm:$0xff] %v301
                  %v303 = vld [vmem:[%s291 + $0x78] sm:$0xff]
                  %304 = vst [vmem:[%s292 + $0x28] sm:$0xff] %v303
                  %v305 = vld [vmem:[%s291 + $0x90] sm:$0xff]
                  %306 = vst [vmem:[%s292 + $0x30] sm:$0xff] %v305
                  %v307 = vld [vmem:[%s291 + $0xa8] sm:$0xff]
                  %308 = vst [vmem:[%s292 + $0x38] sm:$0xff] %v307
                  %v309 = vld [vmem:[%s291 + $0xc0] sm:$0xff]
                  %310 = vst [vmem:[%s292 + $0x40] sm:$0xff] %v309
                  %v311 = vld [vmem:[%s291 + $0xd8] sm:$0xff]
                  %312 = vst [vmem:[%s292 + $0x48] sm:$0xff] %v311
                  %v313 = vld [vmem:[%s291 + $0xf0] sm:$0xff]
                  %314 = vst [vmem:[%s292 + $0x50] sm:$0xff] %v313
                  %v315 = vld [vmem:[%s291 + $0x108] sm:$0xff]
                  %316 = vst [vmem:[%s292 + $0x58] sm:$0xff] %v315
                  %v317 = vld [vmem:[%s291 + $0x120] sm:$0xff]
                  %318 = vst [vmem:[%s292 + $0x60] sm:$0xff] %v317
                  %v319 = vld [vmem:[%s291 + $0x138] sm:$0xff]
                  %320 = vst [vmem:[%s292 + $0x68] sm:$0xff] %v319
                  %v321 = vld [vmem:[%s291 + $0x150] sm:$0xff]
                  %322 = vst [vmem:[%s292 + $0x70] sm:$0xff] %v321
                  %v323 = vld [vmem:[%s291 + $0x168] sm:$0xff]
                  %324 = vst [vmem:[%s292 + $0x78] sm:$0xff] %v323
                  %v325 = vld [vmem:[%s291 + $0x180] sm:$0xff]
                  %326 = vst [vmem:[%s292 + $0x80] sm:$0xff] %v325
                  %v327 = vld [vmem:[%s291 + $0x198] sm:$0xff]
                  %328 = vst [vmem:[%s292 + $0x88] sm:$0xff] %v327
                  %v329 = vld [vmem:[%s291 + $0x1b0] sm:$0xff]
                  %330 = vst [vmem:[%s292 + $0x90] sm:$0xff] %v329
                  %v331 = vld [vmem:[%s291 + $0x1c8] sm:$0xff]
                  %332 = vst [vmem:[%s292 + $0x98] sm:$0xff] %v331
                  %v333 = vld [vmem:[%s291 + $0x1e0] sm:$0xff]
                  %334 = vst [vmem:[%s292 + $0xa0] sm:$0xff] %v333
                  %v335 = vld [vmem:[%s291 + $0x1f8] sm:$0xff]
                  %336 = vst [vmem:[%s292 + $0xa8] sm:$0xff] %v335
                  %v337 = vld [vmem:[%s291 + $0x210] sm:$0xff]
                  %338 = vst [vmem:[%s292 + $0xb0] sm:$0xff] %v337
                  %v339 = vld [vmem:[%s291 + $0x228] sm:$0xff]
                  %340 = vst [vmem:[%s292 + $0xb8] sm:$0xff] %v339
                  %v341 = vld [vmem:[%s291 + $0x240] sm:$0xff]
                  %342 = vst [vmem:[%s292 + $0xc0] sm:$0xff] %v341
                  %v343 = vld [vmem:[%s291 + $0x258] sm:$0xff]
                  %344 = vst [vmem:[%s292 + $0xc8] sm:$0xff] %v343
                  %v345 = vld [vmem:[%s291 + $0x270] sm:$0xff]
                  %346 = vst [vmem:[%s292 + $0xd0] sm:$0xff] %v345
                  %v347 = vld [vmem:[%s291 + $0x288] sm:$0xff]
                  %348 = vst [vmem:[%s292 + $0xd8] sm:$0xff] %v347
                  %v349 = vld [vmem:[%s291 + $0x2a0] sm:$0xff]
                  %350 = vst [vmem:[%s292 + $0xe0] sm:$0xff] %v349
                  %v351 = vld [vmem:[%s291 + $0x2b8] sm:$0xff]
                  %352 = vst [vmem:[%s292 + $0xe8] sm:$0xff] %v351
                  %v353 = vld [vmem:[%s291 + $0x2d0] sm:$0xff]
                  %354 = vst [vmem:[%s292 + $0xf0] sm:$0xff] %v353
                  %v355 = vld [vmem:[%s291 + $0x2e8] sm:$0xff]
                  %356 = vst [vmem:[%s292 + $0xf8] sm:$0xff] %v355
                  %v357 = vld [vmem:[%s291 + $0x300] sm:$0xff]
                  %358 = vst [vmem:[%s292 + $0x100] sm:$0xff] %v357
                  %v359 = vld [vmem:[%s291 + $0x318] sm:$0xff]
                  %360 = vst [vmem:[%s292 + $0x108] sm:$0xff] %v359
                  %v361 = vld [vmem:[%s291 + $0x330] sm:$0xff]
                  %362 = vst [vmem:[%s292 + $0x110] sm:$0xff] %v361
                  %v363 = vld [vmem:[%s291 + $0x348] sm:$0xff]
                  %364 = vst [vmem:[%s292 + $0x118] sm:$0xff] %v363
                  %v365 = vld [vmem:[%s291 + $0x360] sm:$0xff]
                  %366 = vst [vmem:[%s292 + $0x120] sm:$0xff] %v365
                  %v367 = vld [vmem:[%s291 + $0x378] sm:$0xff]
                  %368 = vst [vmem:[%s292 + $0x128] sm:$0xff] %v367
                  %v369 = vld [vmem:[%s291 + $0x390] sm:$0xff]
                  %370 = vst [vmem:[%s292 + $0x130] sm:$0xff] %v369
                  %v371 = vld [vmem:[%s291 + $0x3a8] sm:$0xff]
                  %372 = vst [vmem:[%s292 + $0x138] sm:$0xff] %v371
                  %v373 = vld [vmem:[%s291 + $0x3c0] sm:$0xff]
                  %374 = vst [vmem:[%s292 + $0x140] sm:$0xff] %v373
                  %v375 = vld [vmem:[%s291 + $0x3d8] sm:$0xff]
                  %376 = vst [vmem:[%s292 + $0x148] sm:$0xff] %v375
                  %v377 = vld [vmem:[%s291 + $0x3f0] sm:$0xff]
                  %378 = vst [vmem:[%s292 + $0x150] sm:$0xff] %v377
                  %v379 = vld [vmem:[%s291 + $0x408] sm:$0xff]
                  %380 = vst [vmem:[%s292 + $0x158] sm:$0xff] %v379
                  %v381 = vld [vmem:[%s291 + $0x420] sm:$0xff]
                  %382 = vst [vmem:[%s292 + $0x160] sm:$0xff] %v381
                  %v383 = vld [vmem:[%s291 + $0x438] sm:$0xff]
                  %384 = vst [vmem:[%s292 + $0x168] sm:$0xff] %v383
                  %v385 = vld [vmem:[%s291 + $0x450] sm:$0xff]
                  %386 = vst [vmem:[%s292 + $0x170] sm:$0xff] %v385
                  %v387 = vld [vmem:[%s291 + $0x468] sm:$0xff]
                  %388 = vst [vmem:[%s292 + $0x178] sm:$0xff] %v387
                  %v389 = vld [vmem:[%s291 + $0x480] sm:$0xff]
                  %390 = vst [vmem:[%s292 + $0x180] sm:$0xff] %v389
                  %v391 = vld [vmem:[%s291 + $0x498] sm:$0xff]
                  %392 = vst [vmem:[%s292 + $0x188] sm:$0xff] %v391
                  %v393 = vld [vmem:[%s291 + $0x4b0] sm:$0xff]
                  %394 = vst [vmem:[%s292 + $0x190] sm:$0xff] %v393
                  %v395 = vld [vmem:[%s291 + $0x4c8] sm:$0xff]
                  %396 = vst [vmem:[%s292 + $0x198] sm:$0xff] %v395
                  %v397 = vld [vmem:[%s291 + $0x4e0] sm:$0xff]
                  %398 = vst [vmem:[%s292 + $0x1a0] sm:$0xff] %v397
                  %v399 = vld [vmem:[%s291 + $0x4f8] sm:$0xff]
                  %400 = vst [vmem:[%s292 + $0x1a8] sm:$0xff] %v399
                $region56: #{initial_conv_forward.1} parent=50 // loop_footer
                  %s290 = sadd.s32 1, %s286
                $region57: #{initial_conv_forward.1} parent=50 // loop_footer_branch
                  %285 = sbr.rel target = $region53
                $region58: #{initial_conv_forward.1} parent=50 // loop_exit
                  _
              $region51: #{initial_conv_forward.1} parent=35 // pred_fallthru
                _
              // Predicated region
              $region59: #{initial_conv_forward.1} parent=35 // pred_check
                _
              $region60: #{initial_conv_forward.1} parent=35 // pred_check_branch
                %402 = sbr.rel target = $region62
              $region61: #{initial_conv_forward.1} parent=35 // pred_region
                _
              $region62: #{initial_conv_forward.1} parent=35 // pred_fallthru
                _
            $region36: #{initial_conv_forward.1} parent=31 // pred_fallthru
              _
            // Predicated region
            $region37: #{initial_conv_forward.1} parent=31 // pred_check
              _
            $region38: #{initial_conv_forward.1} parent=31 // pred_check_branch
              %165 = sbr.rel target = $region40
            $region39: #{initial_conv_forward.1} parent=31 // pred_region
              loop: start=0, step=1, limit=1
              $region41: #{initial_conv_forward.1} parent=39 // loop_pre_header
                _
              $region42: #{initial_conv_forward.1} parent=39 // loop_header
                %s168 = sphi 0, %s172
                %p169 = scmp.ge.s32.totalorder %s168, 1
                %s173 = sphi %s159, %s159
                %s174 = sphi %s156, %s156
              $region43: #{initial_conv_forward.1} parent=39 // loop_header_branch
                %171 = sbr.rel (%p169) target = $region47
              $region44: #{initial_conv_forward.1} parent=39 // loop_body
                %v175 = vld [vmem:[%s173] sm:$0xff]
                %176 = vst [vmem:[%s174] sm:$0xff] %v175
                %v177 = vld [vmem:[%s173 + $0x18] sm:$0xff]
                %178 = vst [vmem:[%s174 + $0x8] sm:$0xff] %v177
                %v179 = vld [vmem:[%s173 + $0x30] sm:$0xff]
                %180 = vst [vmem:[%s174 + $0x10] sm:$0xff] %v179
                %v181 = vld [vmem:[%s173 + $0x48] sm:$0xff]
                %182 = vst [vmem:[%s174 + $0x18] sm:$0xff] %v181
                %v183 = vld [vmem:[%s173 + $0x60] sm:$0xff]
                %184 = vst [vmem:[%s174 + $0x20] sm:$0xff] %v183
                %v185 = vld [vmem:[%s173 + $0x78] sm:$0xff]
                %186 = vst [vmem:[%s174 + $0x28] sm:$0xff] %v185
                %v187 = vld [vmem:[%s173 + $0x90] sm:$0xff]
                %188 = vst [vmem:[%s174 + $0x30] sm:$0xff] %v187
                %v189 = vld [vmem:[%s173 + $0xa8] sm:$0xff]
                %190 = vst [vmem:[%s174 + $0x38] sm:$0xff] %v189
                %v191 = vld [vmem:[%s173 + $0xc0] sm:$0xff]
                %192 = vst [vmem:[%s174 + $0x40] sm:$0xff] %v191
                %v193 = vld [vmem:[%s173 + $0xd8] sm:$0xff]
                %194 = vst [vmem:[%s174 + $0x48] sm:$0xff] %v193
                %v195 = vld [vmem:[%s173 + $0xf0] sm:$0xff]
                %196 = vst [vmem:[%s174 + $0x50] sm:$0xff] %v195
                %v197 = vld [vmem:[%s173 + $0x108] sm:$0xff]
                %198 = vst [vmem:[%s174 + $0x58] sm:$0xff] %v197
                %v199 = vld [vmem:[%s173 + $0x120] sm:$0xff]
                %200 = vst [vmem:[%s174 + $0x60] sm:$0xff] %v199
                %v201 = vld [vmem:[%s173 + $0x138] sm:$0xff]
                %202 = vst [vmem:[%s174 + $0x68] sm:$0xff] %v201
                %v203 = vld [vmem:[%s173 + $0x150] sm:$0xff]
                %204 = vst [vmem:[%s174 + $0x70] sm:$0xff] %v203
                %v205 = vld [vmem:[%s173 + $0x168] sm:$0xff]
                %206 = vst [vmem:[%s174 + $0x78] sm:$0xff] %v205
                %v207 = vld [vmem:[%s173 + $0x180] sm:$0xff]
                %208 = vst [vmem:[%s174 + $0x80] sm:$0xff] %v207
                %v209 = vld [vmem:[%s173 + $0x198] sm:$0xff]
                %210 = vst [vmem:[%s174 + $0x88] sm:$0xff] %v209
                %v211 = vld [vmem:[%s173 + $0x1b0] sm:$0xff]
                %212 = vst [vmem:[%s174 + $0x90] sm:$0xff] %v211
                %v213 = vld [vmem:[%s173 + $0x1c8] sm:$0xff]
                %214 = vst [vmem:[%s174 + $0x98] sm:$0xff] %v213
                %v215 = vld [vmem:[%s173 + $0x1e0] sm:$0xff]
                %216 = vst [vmem:[%s174 + $0xa0] sm:$0xff] %v215
                %v217 = vld [vmem:[%s173 + $0x1f8] sm:$0xff]
                %218 = vst [vmem:[%s174 + $0xa8] sm:$0xff] %v217
                %v219 = vld [vmem:[%s173 + $0x210] sm:$0xff]
                %220 = vst [vmem:[%s174 + $0xb0] sm:$0xff] %v219
                %v221 = vld [vmem:[%s173 + $0x228] sm:$0xff]
                %222 = vst [vmem:[%s174 + $0xb8] sm:$0xff] %v221
                %v223 = vld [vmem:[%s173 + $0x240] sm:$0xff]
                %224 = vst [vmem:[%s174 + $0xc0] sm:$0xff] %v223
                %v225 = vld [vmem:[%s173 + $0x258] sm:$0xff]
                %226 = vst [vmem:[%s174 + $0xc8] sm:$0xff] %v225
                %v227 = vld [vmem:[%s173 + $0x270] sm:$0xff]
                %228 = vst [vmem:[%s174 + $0xd0] sm:$0xff] %v227
                %v229 = vld [vmem:[%s173 + $0x288] sm:$0xff]
                %230 = vst [vmem:[%s174 + $0xd8] sm:$0xff] %v229
                %v231 = vld [vmem:[%s173 + $0x2a0] sm:$0xff]
                %232 = vst [vmem:[%s174 + $0xe0] sm:$0xff] %v231
                %v233 = vld [vmem:[%s173 + $0x2b8] sm:$0xff]
                %234 = vst [vmem:[%s174 + $0xe8] sm:$0xff] %v233
                %v235 = vld [vmem:[%s173 + $0x2d0] sm:$0xff]
                %236 = vst [vmem:[%s174 + $0xf0] sm:$0xff] %v235
                %v237 = vld [vmem:[%s173 + $0x2e8] sm:$0xff]
                %238 = vst [vmem:[%s174 + $0xf8] sm:$0xff] %v237
                %v239 = vld [vmem:[%s173 + $0x300] sm:$0xff]
                %240 = vst [vmem:[%s174 + $0x100] sm:$0xff] %v239
                %v241 = vld [vmem:[%s173 + $0x318] sm:$0xff]
                %242 = vst [vmem:[%s174 + $0x108] sm:$0xff] %v241
                %v243 = vld [vmem:[%s173 + $0x330] sm:$0xff]
                %244 = vst [vmem:[%s174 + $0x110] sm:$0xff] %v243
                %v245 = vld [vmem:[%s173 + $0x348] sm:$0xff]
                %246 = vst [vmem:[%s174 + $0x118] sm:$0xff] %v245
                %v247 = vld [vmem:[%s173 + $0x360] sm:$0xff]
                %248 = vst [vmem:[%s174 + $0x120] sm:$0xff] %v247
                %v249 = vld [vmem:[%s173 + $0x378] sm:$0xff]
                %250 = vst [vmem:[%s174 + $0x128] sm:$0xff] %v249
                %v251 = vld [vmem:[%s173 + $0x390] sm:$0xff]
                %252 = vst [vmem:[%s174 + $0x130] sm:$0xff] %v251
                %v253 = vld [vmem:[%s173 + $0x3a8] sm:$0xff]
                %254 = vst [vmem:[%s174 + $0x138] sm:$0xff] %v253
                %v255 = vld [vmem:[%s173 + $0x3c0] sm:$0xff]
                %256 = vst [vmem:[%s174 + $0x140] sm:$0xff] %v255
                %v257 = vld [vmem:[%s173 + $0x3d8] sm:$0xff]
                %258 = vst [vmem:[%s174 + $0x148] sm:$0xff] %v257
                %v259 = vld [vmem:[%s173 + $0x3f0] sm:$0xff]
                %260 = vst [vmem:[%s174 + $0x150] sm:$0xff] %v259
                %v261 = vld [vmem:[%s173 + $0x408] sm:$0xff]
                %262 = vst [vmem:[%s174 + $0x158] sm:$0xff] %v261
                %v263 = vld [vmem:[%s173 + $0x420] sm:$0xff]
                %264 = vst [vmem:[%s174 + $0x160] sm:$0xff] %v263
                %v265 = vld [vmem:[%s173 + $0x438] sm:$0xff]
                %266 = vst [vmem:[%s174 + $0x168] sm:$0xff] %v265
                %v267 = vld [vmem:[%s173 + $0x450] sm:$0xff]
                %268 = vst [vmem:[%s174 + $0x170] sm:$0xff] %v267
                %v269 = vld [vmem:[%s173 + $0x468] sm:$0xff]
                %270 = vst [vmem:[%s174 + $0x178] sm:$0xff] %v269
                %v271 = vld [vmem:[%s173 + $0x480] sm:$0xff]
                %272 = vst [vmem:[%s174 + $0x180] sm:$0xff] %v271
                %v273 = vld [vmem:[%s173 + $0x498] sm:$0xff]
                %274 = vst [vmem:[%s174 + $0x188] sm:$0xff] %v273
                %v275 = vld [vmem:[%s173 + $0x4b0] sm:$0xff]
                %276 = vst [vmem:[%s174 + $0x190] sm:$0xff] %v275
                %v277 = vld [vmem:[%s173 + $0x4c8] sm:$0xff]
                %278 = vst [vmem:[%s174 + $0x198] sm:$0xff] %v277
                %v279 = vld [vmem:[%s173 + $0x4e0] sm:$0xff]
                %280 = vst [vmem:[%s174 + $0x1a0] sm:$0xff] %v279
                %v281 = vld [vmem:[%s173 + $0x4f8] sm:$0xff]
                %282 = vst [vmem:[%s174 + $0x1a8] sm:$0xff] %v281
              $region45: #{initial_conv_forward.1} parent=39 // loop_footer
                %s172 = sadd.s32 1, %s168
              $region46: #{initial_conv_forward.1} parent=39 // loop_footer_branch
                %167 = sbr.rel target = $region42
              $region47: #{initial_conv_forward.1} parent=39 // loop_exit
                _
            $region40: #{initial_conv_forward.1} parent=31 // pred_fallthru
              _
          $region32: #{initial_conv_forward.1} parent=27 // pred_fallthru
            _
          %403 = vnop
        $region28: #{initial_conv_forward.1} parent=23 // pred_fallthru
          _
        // Predicated region
        $region63: #{initial_conv_forward.1} parent=23 // pred_check
          %p404 = pneg %p56
        $region64: #{initial_conv_forward.1} parent=23 // pred_check_branch
          %406 = sbr.rel (%p404) target = $region66
        $region65: #{initial_conv_forward.1} parent=23 // pred_region
          %s407 = smul.u32 32, %s10
          %p408 = scmp.lt.s32.totalorder %s407, 95
          %s409 = scalar_select %p408, %s407, 95
          %s410 = smul.addr %s409, 4
          %s411 = scalar_lea.vmem %s1, %s410
          %s412 = smul.u32 32, %s10
        $region66: #{initial_conv_forward.1} parent=23 // pred_fallthru
          _
      $region24: #{initial_conv_forward.1} parent=5 // pred_fallthru
        _
      %p413 = scmp.le.s32.totalorder 1, %s10
      %p414 = scmp.lt.s32.totalorder %s10, 4
      %p415 = pnand %p413, %p414
      %p416 = pneg %p415
      // Predicated region
      $region67: #{initial_conv_forward.1} parent=5 // pred_check
        _
      $region68: #{initial_conv_forward.1} parent=5 // pred_check_branch
        %418 = sbr.rel (%p415) target = $region70
      $region69: #{initial_conv_forward.1} parent=5 // pred_region
        %s419 = ssub.s32 %s10, 1
        %s420 = sand.u32 %s23, 1
        %s421 = sand.u32 %s23, 1
        %s422 = smul.addr %s421, 432
        %s423 = scalar_lea.vmem [#allocation3], %s422
        // Predicated region
        $region71: #{initial_conv_forward.1} parent=69 // pred_check
          %p424 = pneg %p36
        $region72: #{initial_conv_forward.1} parent=69 // pred_check_branch
          %426 = sbr.rel (%p424) target = $region74
        $region73: #{initial_conv_forward.1} parent=69 // pred_region
          _
        $region74: #{initial_conv_forward.1} parent=69 // pred_fallthru
          _
        %s427 = sand.u32 %s23, 1
        %s428 = sand.u32 %s23, 1
        %s429 = smul.addr %s428, 432
        %s430 = scalar_lea.vmem [#allocation3], %s429
        %p431 = pneg %p36
        %p432 = pneg %p33
        %s433 = smul.u32 32, %s15
        %p434 = scmp.lt.s32.totalorder %s433, 95
        %s435 = scalar_select %p434, %s433, 95
        %s436 = smul.addr %s435, 4
        %s437 = scalar_lea.vmem %s1, %s436
        %p438 = pneg %p62
        %p439 = pneg %p59
        %p440 = pneg %p83
        %p441 = pneg %p80
        %p442 = pneg %p104
        %p443 = pneg %p101
        %p444 = pneg %p125
        %p445 = pneg %p122
        %s446 = smul.u32 2, %s15
        %s447 = smul.u32 32, %s15
        %p448 = scmp.lt.s32.totalorder %s447, 95
        %s449 = scalar_select %p448, %s447, 95
        %s450 = smul.addr %s449, 4
        %s451 = scalar_lea.vmem %s1, %s450
        %s452 = smul.u32 32, %s15
        %p454 = scmp.eq.s32.totalorder %s15, 0
        // Predicated region
        $region75: #{initial_conv_forward.1} parent=69 // pred_check
          %p455 = pneg %p454
        $region76: #{initial_conv_forward.1} parent=69 // pred_check_branch
          %457 = sbr.rel (%p455) target = $region78
        $region77: #{initial_conv_forward.1} parent=69 // pred_region
          %vm458 = vcmask 523264
          %459 = vst.msk [vmem:[#allocation2] sm:$0xff] %vm458, 0.0
          %460 = vst.msk [vmem:[#allocation2 + $0x8] sm:$0xff] %vm458, 0.0
          %461 = vst.msk [vmem:[#allocation2 + $0x10] sm:$0xff] %vm458, 0.0
          %462 = vst.msk [vmem:[#allocation2 + $0x18] sm:$0xff] %vm458, 0.0
          %463 = vst.msk [vmem:[#allocation2 + $0x20] sm:$0xff] %vm458, 0.0
          %464 = vst.msk [vmem:[#allocation2 + $0x28] sm:$0xff] %vm458, 0.0
          %465 = vst.msk [vmem:[#allocation2 + $0x30] sm:$0xff] %vm458, 0.0
          %466 = vst.msk [vmem:[#allocation2 + $0x38] sm:$0xff] %vm458, 0.0
          %467 = vst.msk [vmem:[#allocation2 + $0x40] sm:$0xff] %vm458, 0.0
          %468 = vst.msk [vmem:[#allocation2 + $0x48] sm:$0xff] %vm458, 0.0
          %469 = vst.msk [vmem:[#allocation2 + $0x50] sm:$0xff] %vm458, 0.0
          %470 = vst.msk [vmem:[#allocation2 + $0x58] sm:$0xff] %vm458, 0.0
          %471 = vst.msk [vmem:[#allocation2 + $0x60] sm:$0xff] %vm458, 0.0
          %472 = vst.msk [vmem:[#allocation2 + $0x68] sm:$0xff] %vm458, 0.0
          %473 = vst.msk [vmem:[#allocation2 + $0x70] sm:$0xff] %vm458, 0.0
          %474 = vst.msk [vmem:[#allocation2 + $0x78] sm:$0xff] %vm458, 0.0
          %475 = vst.msk [vmem:[#allocation2 + $0x80] sm:$0xff] %vm458, 0.0
          %476 = vst.msk [vmem:[#allocation2 + $0x88] sm:$0xff] %vm458, 0.0
          %477 = vst.msk [vmem:[#allocation2 + $0x90] sm:$0xff] %vm458, 0.0
          %478 = vst.msk [vmem:[#allocation2 + $0x98] sm:$0xff] %vm458, 0.0
          %479 = vst.msk [vmem:[#allocation2 + $0xa0] sm:$0xff] %vm458, 0.0
          %480 = vst.msk [vmem:[#allocation2 + $0xa8] sm:$0xff] %vm458, 0.0
          %481 = vst.msk [vmem:[#allocation2 + $0xb0] sm:$0xff] %vm458, 0.0
          %482 = vst.msk [vmem:[#allocation2 + $0xb8] sm:$0xff] %vm458, 0.0
          %483 = vst.msk [vmem:[#allocation2 + $0xc0] sm:$0xff] %vm458, 0.0
          %484 = vst.msk [vmem:[#allocation2 + $0xc8] sm:$0xff] %vm458, 0.0
          %485 = vst.msk [vmem:[#allocation2 + $0xd0] sm:$0xff] %vm458, 0.0
          %486 = vst.msk [vmem:[#allocation2 + $0xd8] sm:$0xff] %vm458, 0.0
          %487 = vst.msk [vmem:[#allocation2 + $0xe0] sm:$0xff] %vm458, 0.0
          %488 = vst.msk [vmem:[#allocation2 + $0xe8] sm:$0xff] %vm458, 0.0
          %489 = vst.msk [vmem:[#allocation2 + $0xf0] sm:$0xff] %vm458, 0.0
          %490 = vst.msk [vmem:[#allocation2 + $0xf8] sm:$0xff] %vm458, 0.0
          %491 = vst.msk [vmem:[#allocation2 + $0x100] sm:$0xff] %vm458, 0.0
          %492 = vst.msk [vmem:[#allocation2 + $0x108] sm:$0xff] %vm458, 0.0
          %493 = vst.msk [vmem:[#allocation2 + $0x110] sm:$0xff] %vm458, 0.0
          %494 = vst.msk [vmem:[#allocation2 + $0x118] sm:$0xff] %vm458, 0.0
          %495 = vst.msk [vmem:[#allocation2 + $0x120] sm:$0xff] %vm458, 0.0
          %496 = vst.msk [vmem:[#allocation2 + $0x128] sm:$0xff] %vm458, 0.0
          %497 = vst.msk [vmem:[#allocation2 + $0x130] sm:$0xff] %vm458, 0.0
          %498 = vst.msk [vmem:[#allocation2 + $0x138] sm:$0xff] %vm458, 0.0
          %499 = vst.msk [vmem:[#allocation2 + $0x140] sm:$0xff] %vm458, 0.0
          %500 = vst.msk [vmem:[#allocation2 + $0x148] sm:$0xff] %vm458, 0.0
          %501 = vst.msk [vmem:[#allocation2 + $0x150] sm:$0xff] %vm458, 0.0
          %502 = vst.msk [vmem:[#allocation2 + $0x158] sm:$0xff] %vm458, 0.0
          %503 = vst.msk [vmem:[#allocation2 + $0x160] sm:$0xff] %vm458, 0.0
          %504 = vst.msk [vmem:[#allocation2 + $0x168] sm:$0xff] %vm458, 0.0
          %505 = vst.msk [vmem:[#allocation2 + $0x170] sm:$0xff] %vm458, 0.0
          %506 = vst.msk [vmem:[#allocation2 + $0x178] sm:$0xff] %vm458, 0.0
          %507 = vst.msk [vmem:[#allocation2 + $0x180] sm:$0xff] %vm458, 0.0
          %508 = vst.msk [vmem:[#allocation2 + $0x188] sm:$0xff] %vm458, 0.0
          %509 = vst.msk [vmem:[#allocation2 + $0x190] sm:$0xff] %vm458, 0.0
          %510 = vst.msk [vmem:[#allocation2 + $0x198] sm:$0xff] %vm458, 0.0
          %511 = vst.msk [vmem:[#allocation2 + $0x1a0] sm:$0xff] %vm458, 0.0
          %512 = vst.msk [vmem:[#allocation2 + $0x1a8] sm:$0xff] %vm458, 0.0
        $region78: #{initial_conv_forward.1} parent=69 // pred_fallthru
          _
        %v513 = vld [vmem:[#allocation2] sm:$0xff]
        %v514 = vld [vmem:[#allocation2 + $0x8] sm:$0xff]
        %v515 = vld [vmem:[#allocation2 + $0x10] sm:$0xff]
        %v516 = vld [vmem:[#allocation2 + $0x18] sm:$0xff]
        %v517 = vld [vmem:[#allocation2 + $0x20] sm:$0xff]
        %v518 = vld [vmem:[#allocation2 + $0x28] sm:$0xff]
        %v519 = vld [vmem:[#allocation2 + $0x30] sm:$0xff]
        %v520 = vld [vmem:[#allocation2 + $0x38] sm:$0xff]
        %v521 = vld [vmem:[#allocation2 + $0x40] sm:$0xff]
        %v522 = vld [vmem:[#allocation2 + $0x48] sm:$0xff]
        %v523 = vld [vmem:[#allocation2 + $0x50] sm:$0xff]
        %v524 = vld [vmem:[#allocation2 + $0x58] sm:$0xff]
        %v525 = vld [vmem:[#allocation2 + $0x60] sm:$0xff]
        %v526 = vld [vmem:[#allocation2 + $0x68] sm:$0xff]
        %v527 = vld [vmem:[#allocation2 + $0x70] sm:$0xff]
        %v528 = vld [vmem:[#allocation2 + $0x78] sm:$0xff]
        %v529 = vld [vmem:[#allocation2 + $0x80] sm:$0xff]
        %v530 = vld [vmem:[#allocation2 + $0x88] sm:$0xff]
        %v531 = vld [vmem:[#allocation2 + $0x90] sm:$0xff]
        %v532 = vld [vmem:[#allocation2 + $0x98] sm:$0xff]
        %v533 = vld [vmem:[#allocation2 + $0xa0] sm:$0xff]
        %v534 = vld [vmem:[#allocation2 + $0xa8] sm:$0xff]
        %v535 = vld [vmem:[#allocation2 + $0xb0] sm:$0xff]
        %v536 = vld [vmem:[#allocation2 + $0xb8] sm:$0xff]
        %v537 = vld [vmem:[#allocation2 + $0xc0] sm:$0xff]
        %v538 = vld [vmem:[#allocation2 + $0xc8] sm:$0xff]
        %v539 = vld [vmem:[#allocation2 + $0xd0] sm:$0xff]
        %v540 = vld [vmem:[#allocation2 + $0xd8] sm:$0xff]
        %v541 = vld [vmem:[#allocation2 + $0xe0] sm:$0xff]
        %v542 = vld [vmem:[#allocation2 + $0xe8] sm:$0xff]
        %v543 = vld [vmem:[#allocation2 + $0xf0] sm:$0xff]
        %v544 = vld [vmem:[#allocation2 + $0xf8] sm:$0xff]
        %v545 = vld [vmem:[#allocation2 + $0x100] sm:$0xff]
        %v546 = vld [vmem:[#allocation2 + $0x108] sm:$0xff]
        %v547 = vld [vmem:[#allocation2 + $0x110] sm:$0xff]
        %v548 = vld [vmem:[#allocation2 + $0x118] sm:$0xff]
        %v549 = vld [vmem:[#allocation2 + $0x120] sm:$0xff]
        %v550 = vld [vmem:[#allocation2 + $0x128] sm:$0xff]
        %v551 = vld [vmem:[#allocation2 + $0x130] sm:$0xff]
        %v552 = vld [vmem:[#allocation2 + $0x138] sm:$0xff]
        %v553 = vld [vmem:[#allocation2 + $0x140] sm:$0xff]
        %v554 = vld [vmem:[#allocation2 + $0x148] sm:$0xff]
        %v555 = vld [vmem:[#allocation2 + $0x150] sm:$0xff]
        %v556 = vld [vmem:[#allocation2 + $0x158] sm:$0xff]
        %v557 = vld [vmem:[#allocation2 + $0x160] sm:$0xff]
        %v558 = vld [vmem:[#allocation2 + $0x168] sm:$0xff]
        %v559 = vld [vmem:[#allocation2 + $0x170] sm:$0xff]
        %v560 = vld [vmem:[#allocation2 + $0x178] sm:$0xff]
        %v561 = vld [vmem:[#allocation2 + $0x180] sm:$0xff]
        %v562 = vld [vmem:[#allocation2 + $0x188] sm:$0xff]
        %v563 = vld [vmem:[#allocation2 + $0x190] sm:$0xff]
        %v564 = vld [vmem:[#allocation2 + $0x198] sm:$0xff]
        %v565 = vld [vmem:[#allocation2 + $0x1a0] sm:$0xff]
        %v566 = vld [vmem:[#allocation2 + $0x1a8] sm:$0xff]
        %v567 = vld [vmem:[%s423] sm:$0xff]
        %v568 = vld [vmem:[%s423 + $0x8] sm:$0xff]
        %v569 = vld [vmem:[%s423 + $0x10] sm:$0xff]
        %v570 = vld [vmem:[%s423 + $0x18] sm:$0xff]
        %v571 = vld [vmem:[%s423 + $0x20] sm:$0xff]
        %v572 = vld [vmem:[%s423 + $0x28] sm:$0xff]
        %v573 = vld [vmem:[%s423 + $0x30] sm:$0xff]
        %v574 = vld [vmem:[%s423 + $0x38] sm:$0xff]
        %v575 = vld [vmem:[%s423 + $0x40] sm:$0xff]
        %v576 = vld [vmem:[%s423 + $0x48] sm:$0xff]
        %v577 = vld [vmem:[%s423 + $0x50] sm:$0xff]
        %v578 = vld [vmem:[%s423 + $0x58] sm:$0xff]
        %v579 = vld [vmem:[%s423 + $0x60] sm:$0xff]
        %v580 = vld [vmem:[%s423 + $0x68] sm:$0xff]
        %v581 = vld [vmem:[%s423 + $0x70] sm:$0xff]
        %v582 = vld [vmem:[%s423 + $0x78] sm:$0xff]
        %v583 = vld [vmem:[%s423 + $0x80] sm:$0xff]
        %v584 = vld [vmem:[%s423 + $0x88] sm:$0xff]
        %v585 = vld [vmem:[%s423 + $0x90] sm:$0xff]
        %v586 = vld [vmem:[%s423 + $0x98] sm:$0xff]
        %v587 = vld [vmem:[%s423 + $0xa0] sm:$0xff]
        %v588 = vld [vmem:[%s423 + $0xa8] sm:$0xff]
        %v589 = vld [vmem:[%s423 + $0xb0] sm:$0xff]
        %v590 = vld [vmem:[%s423 + $0xb8] sm:$0xff]
        %v591 = vld [vmem:[%s423 + $0xc0] sm:$0xff]
        %v592 = vld [vmem:[%s423 + $0xc8] sm:$0xff]
        %v593 = vld [vmem:[%s423 + $0xd0] sm:$0xff]
        %v594 = vld [vmem:[%s423 + $0xd8] sm:$0xff]
        %v595 = vld [vmem:[%s423 + $0xe0] sm:$0xff]
        %v596 = vld [vmem:[%s423 + $0xe8] sm:$0xff]
        %v597 = vld [vmem:[%s423 + $0xf0] sm:$0xff]
        %v598 = vld [vmem:[%s423 + $0xf8] sm:$0xff]
        %v599 = vld [vmem:[%s423 + $0x100] sm:$0xff]
        %v600 = vld [vmem:[%s423 + $0x108] sm:$0xff]
        %v601 = vld [vmem:[%s423 + $0x110] sm:$0xff]
        %v602 = vld [vmem:[%s423 + $0x118] sm:$0xff]
        %v603 = vld [vmem:[%s423 + $0x120] sm:$0xff]
        %v604 = vld [vmem:[%s423 + $0x128] sm:$0xff]
        %v605 = vld [vmem:[%s423 + $0x130] sm:$0xff]
        %v606 = vld [vmem:[%s423 + $0x138] sm:$0xff]
        %v607 = vld [vmem:[%s423 + $0x140] sm:$0xff]
        %v608 = vld [vmem:[%s423 + $0x148] sm:$0xff]
        %v609 = vld [vmem:[%s423 + $0x150] sm:$0xff]
        %v610 = vld [vmem:[%s423 + $0x158] sm:$0xff]
        %v611 = vld [vmem:[%s423 + $0x160] sm:$0xff]
        %v612 = vld [vmem:[%s423 + $0x168] sm:$0xff]
        %v613 = vld [vmem:[%s423 + $0x170] sm:$0xff]
        %v614 = vld [vmem:[%s423 + $0x178] sm:$0xff]
        %v615 = vld [vmem:[%s423 + $0x180] sm:$0xff]
        %v616 = vld [vmem:[%s423 + $0x188] sm:$0xff]
        %v617 = vld [vmem:[%s423 + $0x190] sm:$0xff]
        %v618 = vld [vmem:[%s423 + $0x198] sm:$0xff]
        %v619 = vld [vmem:[%s423 + $0x1a0] sm:$0xff]
        %v620 = vld [vmem:[%s423 + $0x1a8] sm:$0xff]
        %v621 = vld [vmem:[%s451] sm:$0xf]
        %v622 = vld [vmem:[%s451 + $0x4] sm:$0xf]
        %v623 = vld [vmem:[%s451 + $0x8] sm:$0xf]
        %v624 = vld [vmem:[%s451 + $0xc] sm:$0xf]
        %v625 = vld [vmem:[%s451 + $0x10] sm:$0xf]
        %v626 = vld [vmem:[%s451 + $0x14] sm:$0xf]
        %v627 = vld [vmem:[%s451 + $0x18] sm:$0xf]
        %v628 = vld [vmem:[%s451 + $0x1c] sm:$0xf]
        %v629 = vld [vmem:[%s451 + $0x20] sm:$0xf]
        %v630 = vld [vmem:[%s451 + $0x24] sm:$0xf]
        %v631 = vld [vmem:[%s451 + $0x28] sm:$0xf]
        %v632 = vld [vmem:[%s451 + $0x2c] sm:$0xf]
        %v633 = vld [vmem:[%s451 + $0x30] sm:$0xf]
        %v634 = vld [vmem:[%s451 + $0x34] sm:$0xf]
        %v635 = vld [vmem:[%s451 + $0x38] sm:$0xf]
        %v636 = vld [vmem:[%s451 + $0x3c] sm:$0xf]
        %v637 = vld [vmem:[%s451 + $0x40] sm:$0xf]
        %v638 = vld [vmem:[%s451 + $0x44] sm:$0xf]
        %v639 = vld [vmem:[%s451 + $0x48] sm:$0xf]
        %v640 = vld [vmem:[%s451 + $0x4c] sm:$0xf]
        %v641 = vld [vmem:[%s451 + $0x50] sm:$0xf]
        %v642 = vld [vmem:[%s451 + $0x54] sm:$0xf]
        %v643 = vld [vmem:[%s451 + $0x58] sm:$0xf]
        %v644 = vld [vmem:[%s451 + $0x5c] sm:$0xf]
        %v645 = vld [vmem:[%s451 + $0x60] sm:$0xf]
        %v646 = vld [vmem:[%s451 + $0x64] sm:$0xf]
        %v647 = vld [vmem:[%s451 + $0x68] sm:$0xf]
        %v648 = vld [vmem:[%s451 + $0x6c] sm:$0xf]
        %v649 = vld [vmem:[%s451 + $0x70] sm:$0xf]
        %v650 = vld [vmem:[%s451 + $0x74] sm:$0xf]
        %v651 = vld [vmem:[%s451 + $0x78] sm:$0xf]
        %v652 = vld [vmem:[%s451 + $0x7c] sm:$0xf]
        %v707 = vunpack.c.l.b16 %v567
        %v708 = vunpack.c.h.b16 %v567
        %v709 = vunpack.c.l.b16 %v568
        %v710 = vunpack.c.h.b16 %v568
        %v711 = vunpack.c.l.b16 %v569
        %v712 = vunpack.c.h.b16 %v569
        %v713 = vunpack.c.l.b16 %v570
        %v714 = vunpack.c.h.b16 %v570
        %v715 = vunpack.c.l.b16 %v571
        %v716 = vunpack.c.h.b16 %v571
        %v717 = vunpack.c.l.b16 %v572
        %v718 = vunpack.c.h.b16 %v572
        %v719 = vunpack.c.l.b16 %v573
        %v720 = vunpack.c.h.b16 %v573
        %v721 = vunpack.c.l.b16 %v574
        %v722 = vunpack.c.h.b16 %v574
        %v723 = vunpack.c.l.b16 %v575
        %v724 = vunpack.c.h.b16 %v575
        %v725 = vunpack.c.l.b16 %v576
        %v726 = vunpack.c.h.b16 %v576
        %v727 = vunpack.c.l.b16 %v577
        %v728 = vunpack.c.h.b16 %v577
        %v729 = vunpack.c.l.b16 %v578
        %v730 = vunpack.c.h.b16 %v578
        %v731 = vunpack.c.l.b16 %v579
        %v732 = vunpack.c.h.b16 %v579
        %v733 = vunpack.c.l.b16 %v580
        %v734 = vunpack.c.h.b16 %v580
        %v735 = vunpack.c.l.b16 %v581
        %v736 = vunpack.c.h.b16 %v581
        %v737 = vunpack.c.l.b16 %v582
        %v738 = vunpack.c.h.b16 %v582
        %v739 = vunpack.c.l.b16 %v583
        %v740 = vunpack.c.h.b16 %v583
        %v741 = vunpack.c.l.b16 %v584
        %v742 = vunpack.c.h.b16 %v584
        %v743 = vunpack.c.l.b16 %v585
        %v744 = vunpack.c.h.b16 %v585
        %v745 = vunpack.c.l.b16 %v586
        %v746 = vunpack.c.h.b16 %v586
        %v747 = vunpack.c.l.b16 %v587
        %v748 = vunpack.c.h.b16 %v587
        %v749 = vunpack.c.l.b16 %v588
        %v750 = vunpack.c.h.b16 %v588
        %v751 = vunpack.c.l.b16 %v589
        %v752 = vunpack.c.h.b16 %v589
        %v753 = vunpack.c.l.b16 %v590
        %v754 = vunpack.c.h.b16 %v590
        %v755 = vunpack.c.l.b16 %v591
        %v756 = vunpack.c.h.b16 %v591
        %v757 = vunpack.c.l.b16 %v592
        %v758 = vunpack.c.h.b16 %v592
        %v759 = vunpack.c.l.b16 %v593
        %v760 = vunpack.c.h.b16 %v593
        %v761 = vunpack.c.l.b16 %v594
        %v762 = vunpack.c.h.b16 %v594
        %v763 = vunpack.c.l.b16 %v595
        %v764 = vunpack.c.h.b16 %v595
        %v765 = vunpack.c.l.b16 %v596
        %v766 = vunpack.c.h.b16 %v596
        %v767 = vunpack.c.l.b16 %v597
        %v768 = vunpack.c.h.b16 %v597
        %v769 = vunpack.c.l.b16 %v598
        %v770 = vunpack.c.h.b16 %v598
        %v771 = vunpack.c.l.b16 %v599
        %v772 = vunpack.c.h.b16 %v599
        %v773 = vunpack.c.l.b16 %v600
        %v774 = vunpack.c.h.b16 %v600
        %v775 = vunpack.c.l.b16 %v601
        %v776 = vunpack.c.h.b16 %v601
        %v777 = vunpack.c.l.b16 %v602
        %v778 = vunpack.c.h.b16 %v602
        %v779 = vunpack.c.l.b16 %v603
        %v780 = vunpack.c.h.b16 %v603
        %v781 = vunpack.c.l.b16 %v604
        %v782 = vunpack.c.h.b16 %v604
        %v783 = vunpack.c.l.b16 %v605
        %v784 = vunpack.c.h.b16 %v605
        %v785 = vunpack.c.l.b16 %v606
        %v786 = vunpack.c.h.b16 %v606
        %v787 = vunpack.c.l.b16 %v607
        %v788 = vunpack.c.h.b16 %v607
        %v789 = vunpack.c.l.b16 %v608
        %v790 = vunpack.c.h.b16 %v608
        %v791 = vunpack.c.l.b16 %v609
        %v792 = vunpack.c.h.b16 %v609
        %v793 = vunpack.c.l.b16 %v610
        %v794 = vunpack.c.h.b16 %v610
        %v795 = vunpack.c.l.b16 %v611
        %v796 = vunpack.c.h.b16 %v611
        %v797 = vunpack.c.l.b16 %v612
        %v798 = vunpack.c.h.b16 %v612
        %v799 = vunpack.c.l.b16 %v613
        %v800 = vunpack.c.h.b16 %v613
        %v801 = vunpack.c.l.b16 %v614
        %v802 = vunpack.c.h.b16 %v614
        %v803 = vunpack.c.l.b16 %v615
        %v804 = vunpack.c.h.b16 %v615
        %v805 = vunpack.c.l.b16 %v616
        %v806 = vunpack.c.h.b16 %v616
        %v807 = vunpack.c.l.b16 %v617
        %v808 = vunpack.c.h.b16 %v617
        %v809 = vunpack.c.l.b16 %v618
        %v810 = vunpack.c.h.b16 %v618
        %v811 = vunpack.c.l.b16 %v619
        %v812 = vunpack.c.h.b16 %v619
        %v813 = vunpack.c.l.b16 %v620
        %v814 = vunpack.c.h.b16 %v620
        %v815 = vpack.c.b16 %v709, %v707
        %v816 = vpack.c.b16 %v710, %v708
        %v817 = vpack.c.b16 %v713, %v711
        %v818 = vpack.c.b16 %v714, %v712
        %v819 = vpack.c.b16 %v717, %v715
        %v820 = vpack.c.b16 %v718, %v716
        %v821 = vpack.c.b16 %v721, %v719
        %v822 = vpack.c.b16 %v722, %v720
        %v823 = vpack.c.b16 %v725, %v723
        %v824 = vpack.c.b16 %v726, %v724
        %v825 = vpack.c.b16 %v729, %v727
        %v826 = vpack.c.b16 %v730, %v728
        %v827 = vpack.c.b16 %v733, %v731
        %v828 = vpack.c.b16 %v734, %v732
        %v829 = vpack.c.b16 %v737, %v735
        %v830 = vpack.c.b16 %v738, %v736
        %v831 = vpack.c.b16 %v741, %v739
        %v832 = vpack.c.b16 %v742, %v740
        %v833 = vpack.c.b16 %v745, %v743
        %v834 = vpack.c.b16 %v746, %v744
        %v835 = vpack.c.b16 %v749, %v747
        %v836 = vpack.c.b16 %v750, %v748
        %v837 = vpack.c.b16 %v753, %v751
        %v838 = vpack.c.b16 %v754, %v752
        %v839 = vpack.c.b16 %v757, %v755
        %v840 = vpack.c.b16 %v758, %v756
        %v841 = vpack.c.b16 %v761, %v759
        %v842 = vpack.c.b16 %v762, %v760
        %v843 = vpack.c.b16 %v765, %v763
        %v844 = vpack.c.b16 %v766, %v764
        %v845 = vpack.c.b16 %v769, %v767
        %v846 = vpack.c.b16 %v770, %v768
        %v847 = vpack.c.b16 %v773, %v771
        %v848 = vpack.c.b16 %v774, %v772
        %v849 = vpack.c.b16 %v777, %v775
        %v850 = vpack.c.b16 %v778, %v776
        %v851 = vpack.c.b16 %v781, %v779
        %v852 = vpack.c.b16 %v782, %v780
        %v853 = vpack.c.b16 %v785, %v783
        %v854 = vpack.c.b16 %v786, %v784
        %v855 = vpack.c.b16 %v789, %v787
        %v856 = vpack.c.b16 %v790, %v788
        %v857 = vpack.c.b16 %v793, %v791
        %v858 = vpack.c.b16 %v794, %v792
        %v859 = vpack.c.b16 %v797, %v795
        %v860 = vpack.c.b16 %v798, %v796
        %v861 = vpack.c.b16 %v801, %v799
        %v862 = vpack.c.b16 %v802, %v800
        %v863 = vpack.c.b16 %v805, %v803
        %v864 = vpack.c.b16 %v806, %v804
        %v865 = vpack.c.b16 %v809, %v807
        %v866 = vpack.c.b16 %v810, %v808
        %v867 = vpack.c.b16 %v813, %v811
        %v868 = vpack.c.b16 %v814, %v812
        %v955 = vunpack.c.l.b16 %v621
        %v956 = vunpack.c.l.b16 %v622
        %v957 = vunpack.c.l.b16 %v623
        %v958 = vunpack.c.l.b16 %v624
        %v959 = vunpack.c.l.b16 %v625
        %v960 = vunpack.c.l.b16 %v626
        %v961 = vunpack.c.l.b16 %v627
        %v962 = vunpack.c.l.b16 %v628
        %v963 = vunpack.c.l.b16 %v629
        %v964 = vunpack.c.l.b16 %v630
        %v965 = vunpack.c.l.b16 %v631
        %v966 = vunpack.c.l.b16 %v632
        %v967 = vunpack.c.l.b16 %v633
        %v968 = vunpack.c.l.b16 %v634
        %v969 = vunpack.c.l.b16 %v635
        %v970 = vunpack.c.l.b16 %v636
        %v971 = vunpack.c.l.b16 %v637
        %v972 = vunpack.c.l.b16 %v638
        %v973 = vunpack.c.l.b16 %v639
        %v974 = vunpack.c.l.b16 %v640
        %v975 = vunpack.c.l.b16 %v641
        %v976 = vunpack.c.l.b16 %v642
        %v977 = vunpack.c.l.b16 %v643
        %v978 = vunpack.c.l.b16 %v644
        %v979 = vunpack.c.l.b16 %v645
        %v980 = vunpack.c.l.b16 %v646
        %v981 = vunpack.c.l.b16 %v647
        %v982 = vunpack.c.l.b16 %v648
        %v983 = vunpack.c.l.b16 %v649
        %v984 = vunpack.c.l.b16 %v650
        %v985 = vunpack.c.l.b16 %v651
        %v986 = vunpack.c.l.b16 %v652
        %v987 = vpack.c.b16 %v956, %v955
        %v988 = vpack.c.b16 %v958, %v957
        %v989 = vpack.c.b16 %v960, %v959
        %v990 = vpack.c.b16 %v962, %v961
        %v991 = vpack.c.b16 %v964, %v963
        %v992 = vpack.c.b16 %v966, %v965
        %v993 = vpack.c.b16 %v968, %v967
        %v994 = vpack.c.b16 %v970, %v969
        %v995 = vpack.c.b16 %v972, %v971
        %v996 = vpack.c.b16 %v974, %v973
        %v997 = vpack.c.b16 %v976, %v975
        %v998 = vpack.c.b16 %v978, %v977
        %v999 = vpack.c.b16 %v980, %v979
        %v1000 = vpack.c.b16 %v982, %v981
        %v1001 = vpack.c.b16 %v984, %v983
        %v1002 = vpack.c.b16 %v986, %v985
        %1019 = vmatprep.subr.bf16.mxu0 0
        %1020 = vmatpush1.bf16.msra.mxu0 %v987
        %1021 = vmatprep.subr.bf16.mxu0 0
        %1022 = vmatpush1.bf16.msra.mxu0 %v988
        %1023 = vmatprep.subr.bf16.mxu0 0
        %1024 = vmatpush1.bf16.msra.mxu0 %v989
        %1025 = vmatprep.subr.bf16.mxu0 0
        %1026 = vmatpush1.bf16.msra.mxu0 %v990
        %1027 = vmatprep.subr.bf16.mxu0 0
        %1028 = vmatpush1.bf16.msra.mxu0 %v991
        %1029 = vmatprep.subr.bf16.mxu0 0
        %1030 = vmatpush1.bf16.msra.mxu0 %v992
        %1031 = vmatprep.subr.bf16.mxu0 0
        %1032 = vmatpush1.bf16.msra.mxu0 %v993
        %1033 = vmatprep.subr.bf16.mxu0 0
        %1034 = vmatpush1.bf16.msra.mxu0 %v994
        %1035 = vmatprep.subr.bf16.mxu0 0
        %1036 = vmatpush1.bf16.msra.mxu0 %v995
        %1037 = vmatprep.subr.bf16.mxu0 0
        %1038 = vmatpush1.bf16.msra.mxu0 %v996
        %1039 = vmatprep.subr.bf16.mxu0 0
        %1040 = vmatpush1.bf16.msra.mxu0 %v997
        %1041 = vmatprep.subr.bf16.mxu0 0
        %1042 = vmatpush1.bf16.msra.mxu0 %v998
        %1043 = vmatprep.subr.bf16.mxu0 0
        %1044 = vmatpush1.bf16.msra.mxu0 %v999
        %1045 = vmatprep.subr.bf16.mxu0 0
        %1046 = vmatpush1.bf16.msra.mxu0 %v1000
        %1047 = vmatprep.subr.bf16.mxu0 0
        %1048 = vmatpush1.bf16.msra.mxu0 %v1001
        %1049 = vmatprep.subr.bf16.mxu0 0
        %1050 = vmatpush1.bf16.msra.mxu0 %v1002
        %1051 = vmatprep.mubr.bf16.mxu0 %v816
        %1052 = vmatmul.mubr.bf16.gmra.mrb[0].mxu0 %v815
        %v1053 = vpop.f32.mrb[0].mxu0
        %v1054 = vadd.f32 0.0, %v1053
        %v1055 = vpop.f32.mrb[0].mxu0
        %v1056 = vpop.f32.mrb[0].mxu0
        %v1057 = vadd.f32 0.0, %v1056
        %v1058 = vpop.f32.mrb[0].mxu0
        %1059 = vmatprep.mubr.bf16.mxu0 %v818
        %1060 = vmatmul.mubr.bf16.gmra.mrb[0].mxu0 %v817
        %v1061 = vpop.f32.mrb[0].mxu0
        %v1062 = vadd.f32 0.0, %v1061
        %v1063 = vpop.f32.mrb[0].mxu0
        %v1064 = vpop.f32.mrb[0].mxu0
        %v1065 = vadd.f32 0.0, %v1064
        %v1066 = vpop.f32.mrb[0].mxu0
        %1067 = vmatprep.mubr.bf16.mxu0 %v820
        %1068 = vmatmul.mubr.bf16.gmra.mrb[0].mxu0 %v819
        %v1069 = vpop.f32.mrb[0].mxu0
        %v1070 = vadd.f32 0.0, %v1069
        %v1071 = vpop.f32.mrb[0].mxu0
        %v1072 = vpop.f32.mrb[0].mxu0
        %v1073 = vadd.f32 0.0, %v1072
        %v1074 = vpop.f32.mrb[0].mxu0
        %1075 = vmatprep.mubr.bf16.mxu0 %v822
        %1076 = vmatmul.mubr.bf16.gmra.mrb[0].mxu0 %v821
        %v1077 = vpop.f32.mrb[0].mxu0
        %v1078 = vadd.f32 0.0, %v1077
        %v1079 = vpop.f32.mrb[0].mxu0
        %v1080 = vpop.f32.mrb[0].mxu0
        %v1081 = vadd.f32 0.0, %v1080
        %v1082 = vpop.f32.mrb[0].mxu0
        %1083 = vmatprep.mubr.bf16.mxu0 %v824
        %1084 = vmatmul.mubr.bf16.gmra.mrb[0].mxu0 %v823
        %v1085 = vpop.f32.mrb[0].mxu0
        %v1086 = vadd.f32 0.0, %v1085
        %v1087 = vpop.f32.mrb[0].mxu0
        %v1088 = vpop.f32.mrb[0].mxu0
        %v1089 = vadd.f32 0.0, %v1088
        %v1090 = vpop.f32.mrb[0].mxu0
        %1091 = vmatprep.mubr.bf16.mxu0 %v826
        %1092 = vmatmul.mubr.bf16.gmra.mrb[0].mxu0 %v825
        %v1093 = vpop.f32.mrb[0].mxu0
        %v1094 = vadd.f32 0.0, %v1093
        %v1095 = vpop.f32.mrb[0].mxu0
        %v1096 = vpop.f32.mrb[0].mxu0
        %v1097 = vadd.f32 0.0, %v1096
        %v1098 = vpop.f32.mrb[0].mxu0
        %1099 = vmatprep.mubr.bf16.mxu0 %v828
        %1100 = vmatmul.mubr.bf16.gmra.mrb[0].mxu0 %v827
        %v1101 = vpop.f32.mrb[0].mxu0
        %v1102 = vadd.f32 0.0, %v1101
        %v1103 = vpop.f32.mrb[0].mxu0
        %v1104 = vpop.f32.mrb[0].mxu0
        %v1105 = vadd.f32 0.0, %v1104
        %v1106 = vpop.f32.mrb[0].mxu0
        %1107 = vmatprep.mubr.bf16.mxu0 %v830
        %1108 = vmatmul.mubr.bf16.gmra.mrb[0].mxu0 %v829
        %v1109 = vpop.f32.mrb[0].mxu0
        %v1110 = vadd.f32 0.0, %v1109
        %v1111 = vpop.f32.mrb[0].mxu0
        %v1112 = vpop.f32.mrb[0].mxu0
        %v1113 = vadd.f32 0.0, %v1112
        %v1114 = vpop.f32.mrb[0].mxu0
        %1115 = vmatprep.mubr.bf16.mxu0 %v832
        %1116 = vmatmul.mubr.bf16.gmra.mrb[0].mxu0 %v831
        %v1117 = vpop.f32.mrb[0].mxu0
        %v1118 = vadd.f32 0.0, %v1117
        %v1119 = vpop.f32.mrb[0].mxu0
        %v1120 = vpop.f32.mrb[0].mxu0
        %v1121 = vadd.f32 0.0, %v1120
        %v1122 = vpop.f32.mrb[0].mxu0
        %1123 = vmatprep.mubr.bf16.mxu0 %v834
        %1124 = vmatmul.mubr.bf16.gmra.mrb[0].mxu0 %v833
        %v1125 = vpop.f32.mrb[0].mxu0
        %v1126 = vadd.f32 0.0, %v1125
        %v1127 = vpop.f32.mrb[0].mxu0
        %v1128 = vpop.f32.mrb[0].mxu0
        %v1129 = vadd.f32 0.0, %v1128
        %v1130 = vpop.f32.mrb[0].mxu0
        %1131 = vmatprep.mubr.bf16.mxu0 %v836
        %1132 = vmatmul.mubr.bf16.gmra.mrb[0].mxu0 %v835
        %v1133 = vpop.f32.mrb[0].mxu0
        %v1134 = vadd.f32 0.0, %v1133
        %v1135 = vpop.f32.mrb[0].mxu0
        %v1136 = vpop.f32.mrb[0].mxu0
        %v1137 = vadd.f32 0.0, %v1136
        %v1138 = vpop.f32.mrb[0].mxu0
        %1139 = vmatprep.mubr.bf16.mxu0 %v838
        %1140 = vmatmul.mubr.bf16.gmra.mrb[0].mxu0 %v837
        %v1141 = vpop.f32.mrb[0].mxu0
        %v1142 = vadd.f32 0.0, %v1141
        %v1143 = vpop.f32.mrb[0].mxu0
        %v1144 = vpop.f32.mrb[0].mxu0
        %v1145 = vadd.f32 0.0, %v1144
        %v1146 = vpop.f32.mrb[0].mxu0
        %1147 = vmatprep.mubr.bf16.mxu0 %v840
        %1148 = vmatmul.mubr.bf16.gmra.mrb[0].mxu0 %v839
        %v1149 = vpop.f32.mrb[0].mxu0
        %v1150 = vadd.f32 0.0, %v1149
        %v1151 = vpop.f32.mrb[0].mxu0
        %v1152 = vpop.f32.mrb[0].mxu0
        %v1153 = vadd.f32 0.0, %v1152
        %v1154 = vpop.f32.mrb[0].mxu0
        %1155 = vmatprep.mubr.bf16.mxu0 %v842
        %1156 = vmatmul.mubr.bf16.gmra.mrb[0].mxu0 %v841
        %v1157 = vpop.f32.mrb[0].mxu0
        %v1158 = vadd.f32 0.0, %v1157
        %v1159 = vpop.f32.mrb[0].mxu0
        %v1160 = vpop.f32.mrb[0].mxu0
        %v1161 = vadd.f32 0.0, %v1160
        %v1162 = vpop.f32.mrb[0].mxu0
        %1163 = vmatprep.mubr.bf16.mxu0 %v844
        %1164 = vmatmul.mubr.bf16.gmra.mrb[0].mxu0 %v843
        %v1165 = vpop.f32.mrb[0].mxu0
        %v1166 = vadd.f32 0.0, %v1165
        %v1167 = vpop.f32.mrb[0].mxu0
        %v1168 = vpop.f32.mrb[0].mxu0
        %v1169 = vadd.f32 0.0, %v1168
        %v1170 = vpop.f32.mrb[0].mxu0
        %1171 = vmatprep.mubr.bf16.mxu0 %v846
        %1172 = vmatmul.mubr.bf16.gmra.mrb[0].mxu0 %v845
        %v1173 = vpop.f32.mrb[0].mxu0
        %v1174 = vadd.f32 0.0, %v1173
        %v1175 = vpop.f32.mrb[0].mxu0
        %v1176 = vpop.f32.mrb[0].mxu0
        %v1177 = vadd.f32 0.0, %v1176
        %v1178 = vpop.f32.mrb[0].mxu0
        %1179 = vmatprep.mubr.bf16.mxu0 %v848
        %1180 = vmatmul.mubr.bf16.gmra.mrb[0].mxu0 %v847
        %v1181 = vpop.f32.mrb[0].mxu0
        %v1182 = vadd.f32 0.0, %v1181
        %v1183 = vpop.f32.mrb[0].mxu0
        %v1184 = vpop.f32.mrb[0].mxu0
        %v1185 = vadd.f32 0.0, %v1184
        %v1186 = vpop.f32.mrb[0].mxu0
        %1187 = vmatprep.mubr.bf16.mxu0 %v850
        %1188 = vmatmul.mubr.bf16.gmra.mrb[0].mxu0 %v849
        %v1189 = vpop.f32.mrb[0].mxu0
        %v1190 = vadd.f32 0.0, %v1189
        %v1191 = vpop.f32.mrb[0].mxu0
        %v1192 = vpop.f32.mrb[0].mxu0
        %v1193 = vadd.f32 0.0, %v1192
        %v1194 = vpop.f32.mrb[0].mxu0
        %1195 = vmatprep.mubr.bf16.mxu0 %v852
        %1196 = vmatmul.mubr.bf16.gmra.mrb[0].mxu0 %v851
        %v1197 = vpop.f32.mrb[0].mxu0
        %v1198 = vadd.f32 0.0, %v1197
        %v1199 = vpop.f32.mrb[0].mxu0
        %v1200 = vpop.f32.mrb[0].mxu0
        %v1201 = vadd.f32 0.0, %v1200
        %v1202 = vpop.f32.mrb[0].mxu0
        %1203 = vmatprep.mubr.bf16.mxu0 %v854
        %1204 = vmatmul.mubr.bf16.gmra.mrb[0].mxu0 %v853
        %v1205 = vpop.f32.mrb[0].mxu0
        %v1206 = vadd.f32 0.0, %v1205
        %v1207 = vpop.f32.mrb[0].mxu0
        %v1208 = vpop.f32.mrb[0].mxu0
        %v1209 = vadd.f32 0.0, %v1208
        %v1210 = vpop.f32.mrb[0].mxu0
        %1211 = vmatprep.mubr.bf16.mxu0 %v856
        %1212 = vmatmul.mubr.bf16.gmra.mrb[0].mxu0 %v855
        %v1213 = vpop.f32.mrb[0].mxu0
        %v1214 = vadd.f32 0.0, %v1213
        %v1215 = vpop.f32.mrb[0].mxu0
        %v1216 = vpop.f32.mrb[0].mxu0
        %v1217 = vadd.f32 0.0, %v1216
        %v1218 = vpop.f32.mrb[0].mxu0
        %1219 = vmatprep.mubr.bf16.mxu0 %v858
        %1220 = vmatmul.mubr.bf16.gmra.mrb[0].mxu0 %v857
        %v1221 = vpop.f32.mrb[0].mxu0
        %v1222 = vadd.f32 0.0, %v1221
        %v1223 = vpop.f32.mrb[0].mxu0
        %v1224 = vpop.f32.mrb[0].mxu0
        %v1225 = vadd.f32 0.0, %v1224
        %v1226 = vpop.f32.mrb[0].mxu0
        %1227 = vmatprep.mubr.bf16.mxu0 %v860
        %1228 = vmatmul.mubr.bf16.gmra.mrb[0].mxu0 %v859
        %v1229 = vpop.f32.mrb[0].mxu0
        %v1230 = vadd.f32 0.0, %v1229
        %v1231 = vpop.f32.mrb[0].mxu0
        %v1232 = vpop.f32.mrb[0].mxu0
        %v1233 = vadd.f32 0.0, %v1232
        %v1234 = vpop.f32.mrb[0].mxu0
        %1235 = vmatprep.mubr.bf16.mxu0 %v862
        %1236 = vmatmul.mubr.bf16.gmra.mrb[0].mxu0 %v861
        %v1237 = vpop.f32.mrb[0].mxu0
        %v1238 = vadd.f32 0.0, %v1237
        %v1239 = vpop.f32.mrb[0].mxu0
        %v1240 = vpop.f32.mrb[0].mxu0
        %v1241 = vadd.f32 0.0, %v1240
        %v1242 = vpop.f32.mrb[0].mxu0
        %1243 = vmatprep.mubr.bf16.mxu0 %v864
        %1244 = vmatmul.mubr.bf16.gmra.mrb[0].mxu0 %v863
        %v1245 = vpop.f32.mrb[0].mxu0
        %v1246 = vadd.f32 0.0, %v1245
        %v1247 = vpop.f32.mrb[0].mxu0
        %v1248 = vpop.f32.mrb[0].mxu0
        %v1249 = vadd.f32 0.0, %v1248
        %v1250 = vpop.f32.mrb[0].mxu0
        %1251 = vmatprep.mubr.bf16.mxu0 %v866
        %1252 = vmatmul.mubr.bf16.gmra.mrb[0].mxu0 %v865
        %v1253 = vpop.f32.mrb[0].mxu0
        %v1254 = vadd.f32 0.0, %v1253
        %v1255 = vpop.f32.mrb[0].mxu0
        %v1256 = vpop.f32.mrb[0].mxu0
        %v1257 = vadd.f32 0.0, %v1256
        %v1258 = vpop.f32.mrb[0].mxu0
        %1259 = vmatprep.mubr.bf16.mxu0 %v868
        %1260 = vmatmul.mubr.bf16.gmra.mrb[0].mxu0 %v867
        %v1261 = vpop.f32.mrb[0].mxu0
        %v1262 = vadd.f32 0.0, %v1261
        %v1263 = vpop.f32.mrb[0].mxu0
        %v1264 = vpop.f32.mrb[0].mxu0
        %v1265 = vadd.f32 0.0, %v1264
        %v1266 = vpop.f32.mrb[0].mxu0
        %1267 = vdwg.mxu0
        %v1268 = vadd.f32 %v513, %v1054
        %v1269 = vadd.f32 %v514, %v1057
        %v1270 = vadd.f32 %v515, %v1062
        %v1271 = vadd.f32 %v516, %v1065
        %v1272 = vadd.f32 %v517, %v1070
        %v1273 = vadd.f32 %v518, %v1073
        %v1274 = vadd.f32 %v519, %v1078
        %v1275 = vadd.f32 %v520, %v1081
        %v1276 = vadd.f32 %v521, %v1086
        %v1277 = vadd.f32 %v522, %v1089
        %v1278 = vadd.f32 %v523, %v1094
        %v1279 = vadd.f32 %v524, %v1097
        %v1280 = vadd.f32 %v525, %v1102
        %v1281 = vadd.f32 %v526, %v1105
        %v1282 = vadd.f32 %v527, %v1110
        %v1283 = vadd.f32 %v528, %v1113
        %v1284 = vadd.f32 %v529, %v1118
        %v1285 = vadd.f32 %v530, %v1121
        %v1286 = vadd.f32 %v531, %v1126
        %v1287 = vadd.f32 %v532, %v1129
        %v1288 = vadd.f32 %v533, %v1134
        %v1289 = vadd.f32 %v534, %v1137
        %v1290 = vadd.f32 %v535, %v1142
        %v1291 = vadd.f32 %v536, %v1145
        %v1292 = vadd.f32 %v537, %v1150
        %v1293 = vadd.f32 %v538, %v1153
        %v1294 = vadd.f32 %v539, %v1158
        %v1295 = vadd.f32 %v540, %v1161
        %v1296 = vadd.f32 %v541, %v1166
        %v1297 = vadd.f32 %v542, %v1169
        %v1298 = vadd.f32 %v543, %v1174
        %v1299 = vadd.f32 %v544, %v1177
        %v1300 = vadd.f32 %v545, %v1182
        %v1301 = vadd.f32 %v546, %v1185
        %v1302 = vadd.f32 %v547, %v1190
        %v1303 = vadd.f32 %v548, %v1193
        %v1304 = vadd.f32 %v549, %v1198
        %v1305 = vadd.f32 %v550, %v1201
        %v1306 = vadd.f32 %v551, %v1206
        %v1307 = vadd.f32 %v552, %v1209
        %v1308 = vadd.f32 %v553, %v1214
        %v1309 = vadd.f32 %v554, %v1217
        %v1310 = vadd.f32 %v555, %v1222
        %v1311 = vadd.f32 %v556, %v1225
        %v1312 = vadd.f32 %v557, %v1230
        %v1313 = vadd.f32 %v558, %v1233
        %v1314 = vadd.f32 %v559, %v1238
        %v1315 = vadd.f32 %v560, %v1241
        %v1316 = vadd.f32 %v561, %v1246
        %v1317 = vadd.f32 %v562, %v1249
        %v1318 = vadd.f32 %v563, %v1254
        %v1319 = vadd.f32 %v564, %v1257
        %v1320 = vadd.f32 %v565, %v1262
        %v1321 = vadd.f32 %v566, %v1265
        %vm1322 = vcmask 523264
        %1323 = vst.msk [vmem:[#allocation2] sm:$0xff] %vm1322, %v1268
        %1324 = vst.msk [vmem:[#allocation2 + $0x8] sm:$0xff] %vm1322, %v1269
        %1325 = vst.msk [vmem:[#allocation2 + $0x10] sm:$0xff] %vm1322, %v1270
        %1326 = vst.msk [vmem:[#allocation2 + $0x18] sm:$0xff] %vm1322, %v1271
        %1327 = vst.msk [vmem:[#allocation2 + $0x20] sm:$0xff] %vm1322, %v1272
        %1328 = vst.msk [vmem:[#allocation2 + $0x28] sm:$0xff] %vm1322, %v1273
        %1329 = vst.msk [vmem:[#allocation2 + $0x30] sm:$0xff] %vm1322, %v1274
        %1330 = vst.msk [vmem:[#allocation2 + $0x38] sm:$0xff] %vm1322, %v1275
        %1331 = vst.msk [vmem:[#allocation2 + $0x40] sm:$0xff] %vm1322, %v1276
        %1332 = vst.msk [vmem:[#allocation2 + $0x48] sm:$0xff] %vm1322, %v1277
        %1333 = vst.msk [vmem:[#allocation2 + $0x50] sm:$0xff] %vm1322, %v1278
        %1334 = vst.msk [vmem:[#allocation2 + $0x58] sm:$0xff] %vm1322, %v1279
        %1335 = vst.msk [vmem:[#allocation2 + $0x60] sm:$0xff] %vm1322, %v1280
        %1336 = vst.msk [vmem:[#allocation2 + $0x68] sm:$0xff] %vm1322, %v1281
        %1337 = vst.msk [vmem:[#allocation2 + $0x70] sm:$0xff] %vm1322, %v1282
        %1338 = vst.msk [vmem:[#allocation2 + $0x78] sm:$0xff] %vm1322, %v1283
        %1339 = vst.msk [vmem:[#allocation2 + $0x80] sm:$0xff] %vm1322, %v1284
        %1340 = vst.msk [vmem:[#allocation2 + $0x88] sm:$0xff] %vm1322, %v1285
        %1341 = vst.msk [vmem:[#allocation2 + $0x90] sm:$0xff] %vm1322, %v1286
        %1342 = vst.msk [vmem:[#allocation2 + $0x98] sm:$0xff] %vm1322, %v1287
        %1343 = vst.msk [vmem:[#allocation2 + $0xa0] sm:$0xff] %vm1322, %v1288
        %1344 = vst.msk [vmem:[#allocation2 + $0xa8] sm:$0xff] %vm1322, %v1289
        %1345 = vst.msk [vmem:[#allocation2 + $0xb0] sm:$0xff] %vm1322, %v1290
        %1346 = vst.msk [vmem:[#allocation2 + $0xb8] sm:$0xff] %vm1322, %v1291
        %1347 = vst.msk [vmem:[#allocation2 + $0xc0] sm:$0xff] %vm1322, %v1292
        %1348 = vst.msk [vmem:[#allocation2 + $0xc8] sm:$0xff] %vm1322, %v1293
        %1349 = vst.msk [vmem:[#allocation2 + $0xd0] sm:$0xff] %vm1322, %v1294
        %1350 = vst.msk [vmem:[#allocation2 + $0xd8] sm:$0xff] %vm1322, %v1295
        %1351 = vst.msk [vmem:[#allocation2 + $0xe0] sm:$0xff] %vm1322, %v1296
        %1352 = vst.msk [vmem:[#allocation2 + $0xe8] sm:$0xff] %vm1322, %v1297
        %1353 = vst.msk [vmem:[#allocation2 + $0xf0] sm:$0xff] %vm1322, %v1298
        %1354 = vst.msk [vmem:[#allocation2 + $0xf8] sm:$0xff] %vm1322, %v1299
        %1355 = vst.msk [vmem:[#allocation2 + $0x100] sm:$0xff] %vm1322, %v1300
        %1356 = vst.msk [vmem:[#allocation2 + $0x108] sm:$0xff] %vm1322, %v1301
        %1357 = vst.msk [vmem:[#allocation2 + $0x110] sm:$0xff] %vm1322, %v1302
        %1358 = vst.msk [vmem:[#allocation2 + $0x118] sm:$0xff] %vm1322, %v1303
        %1359 = vst.msk [vmem:[#allocation2 + $0x120] sm:$0xff] %vm1322, %v1304
        %1360 = vst.msk [vmem:[#allocation2 + $0x128] sm:$0xff] %vm1322, %v1305
        %1361 = vst.msk [vmem:[#allocation2 + $0x130] sm:$0xff] %vm1322, %v1306
        %1362 = vst.msk [vmem:[#allocation2 + $0x138] sm:$0xff] %vm1322, %v1307
        %1363 = vst.msk [vmem:[#allocation2 + $0x140] sm:$0xff] %vm1322, %v1308
        %1364 = vst.msk [vmem:[#allocation2 + $0x148] sm:$0xff] %vm1322, %v1309
        %1365 = vst.msk [vmem:[#allocation2 + $0x150] sm:$0xff] %vm1322, %v1310
        %1366 = vst.msk [vmem:[#allocation2 + $0x158] sm:$0xff] %vm1322, %v1311
        %1367 = vst.msk [vmem:[#allocation2 + $0x160] sm:$0xff] %vm1322, %v1312
        %1368 = vst.msk [vmem:[#allocation2 + $0x168] sm:$0xff] %vm1322, %v1313
        %1369 = vst.msk [vmem:[#allocation2 + $0x170] sm:$0xff] %vm1322, %v1314
        %1370 = vst.msk [vmem:[#allocation2 + $0x178] sm:$0xff] %vm1322, %v1315
        %1371 = vst.msk [vmem:[#allocation2 + $0x180] sm:$0xff] %vm1322, %v1316
        %1372 = vst.msk [vmem:[#allocation2 + $0x188] sm:$0xff] %vm1322, %v1317
        %1373 = vst.msk [vmem:[#allocation2 + $0x190] sm:$0xff] %vm1322, %v1318
        %1374 = vst.msk [vmem:[#allocation2 + $0x198] sm:$0xff] %vm1322, %v1319
        %1375 = vst.msk [vmem:[#allocation2 + $0x1a0] sm:$0xff] %vm1322, %v1320
        %1376 = vst.msk [vmem:[#allocation2 + $0x1a8] sm:$0xff] %vm1322, %v1321
        %p1377 = scmp.eq.s32.totalorder %s15, 2
        // Predicated region
        $region79: #{initial_conv_forward.1} parent=69 // pred_check
          %p1378 = pneg %p1377
        $region80: #{initial_conv_forward.1} parent=69 // pred_check_branch
          %1380 = sbr.rel (%p1378) target = $region82
        $region81: #{initial_conv_forward.1} parent=69 // pred_region
          %v1381 = vld [vmem:[#allocation2] sm:$0xff]
          %v1382 = vld [vmem:[#allocation2 + $0x8] sm:$0xff]
          %v1383 = vld [vmem:[#allocation2 + $0x10] sm:$0xff]
          %v1384 = vld [vmem:[#allocation2 + $0x18] sm:$0xff]
          %v1385 = vld [vmem:[#allocation2 + $0x20] sm:$0xff]
          %v1386 = vld [vmem:[#allocation2 + $0x28] sm:$0xff]
          %v1387 = vld [vmem:[#allocation2 + $0x30] sm:$0xff]
          %v1388 = vld [vmem:[#allocation2 + $0x38] sm:$0xff]
          %v1389 = vld [vmem:[#allocation2 + $0x40] sm:$0xff]
          %v1390 = vld [vmem:[#allocation2 + $0x48] sm:$0xff]
          %v1391 = vld [vmem:[#allocation2 + $0x50] sm:$0xff]
          %v1392 = vld [vmem:[#allocation2 + $0x58] sm:$0xff]
          %v1393 = vld [vmem:[#allocation2 + $0x60] sm:$0xff]
          %v1394 = vld [vmem:[#allocation2 + $0x68] sm:$0xff]
          %v1395 = vld [vmem:[#allocation2 + $0x70] sm:$0xff]
          %v1396 = vld [vmem:[#allocation2 + $0x78] sm:$0xff]
          %v1397 = vld [vmem:[#allocation2 + $0x80] sm:$0xff]
          %v1398 = vld [vmem:[#allocation2 + $0x88] sm:$0xff]
          %v1399 = vld [vmem:[#allocation2 + $0x90] sm:$0xff]
          %v1400 = vld [vmem:[#allocation2 + $0x98] sm:$0xff]
          %v1401 = vld [vmem:[#allocation2 + $0xa0] sm:$0xff]
          %v1402 = vld [vmem:[#allocation2 + $0xa8] sm:$0xff]
          %v1403 = vld [vmem:[#allocation2 + $0xb0] sm:$0xff]
          %v1404 = vld [vmem:[#allocation2 + $0xb8] sm:$0xff]
          %v1405 = vld [vmem:[#allocation2 + $0xc0] sm:$0xff]
          %v1406 = vld [vmem:[#allocation2 + $0xc8] sm:$0xff]
          %v1407 = vld [vmem:[#allocation2 + $0xd0] sm:$0xff]
          %v1408 = vld [vmem:[#allocation2 + $0xd8] sm:$0xff]
          %v1409 = vld [vmem:[#allocation2 + $0xe0] sm:$0xff]
          %v1410 = vld [vmem:[#allocation2 + $0xe8] sm:$0xff]
          %v1411 = vld [vmem:[#allocation2 + $0xf0] sm:$0xff]
          %v1412 = vld [vmem:[#allocation2 + $0xf8] sm:$0xff]
          %v1413 = vld [vmem:[#allocation2 + $0x100] sm:$0xff]
          %v1414 = vld [vmem:[#allocation2 + $0x108] sm:$0xff]
          %v1415 = vld [vmem:[#allocation2 + $0x110] sm:$0xff]
          %v1416 = vld [vmem:[#allocation2 + $0x118] sm:$0xff]
          %v1417 = vld [vmem:[#allocation2 + $0x120] sm:$0xff]
          %v1418 = vld [vmem:[#allocation2 + $0x128] sm:$0xff]
          %v1419 = vld [vmem:[#allocation2 + $0x130] sm:$0xff]
          %v1420 = vld [vmem:[#allocation2 + $0x138] sm:$0xff]
          %v1421 = vld [vmem:[#allocation2 + $0x140] sm:$0xff]
          %v1422 = vld [vmem:[#allocation2 + $0x148] sm:$0xff]
          %v1423 = vld [vmem:[#allocation2 + $0x150] sm:$0xff]
          %v1424 = vld [vmem:[#allocation2 + $0x158] sm:$0xff]
          %v1425 = vld [vmem:[#allocation2 + $0x160] sm:$0xff]
          %v1426 = vld [vmem:[#allocation2 + $0x168] sm:$0xff]
          %v1427 = vld [vmem:[#allocation2 + $0x170] sm:$0xff]
          %v1428 = vld [vmem:[#allocation2 + $0x178] sm:$0xff]
          %v1429 = vld [vmem:[#allocation2 + $0x180] sm:$0xff]
          %v1430 = vld [vmem:[#allocation2 + $0x188] sm:$0xff]
          %v1431 = vld [vmem:[#allocation2 + $0x190] sm:$0xff]
          %v1432 = vld [vmem:[#allocation2 + $0x198] sm:$0xff]
          %v1433 = vld [vmem:[#allocation2 + $0x1a0] sm:$0xff]
          %v1434 = vld [vmem:[#allocation2 + $0x1a8] sm:$0xff]
          %1462 = vrot.lane.b32.xlu0 %v1408, 64
          %v1463 = vpop.permute.xlu0 %1462
          %1464 = vrot.lane.b32.xlu0 %v1409, 64
          %v1465 = vpop.permute.xlu0 %1464
          %1466 = vrot.lane.b32.xlu0 %v1410, 64
          %v1467 = vpop.permute.xlu0 %1466
          %1468 = vrot.lane.b32.xlu0 %v1411, 64
          %v1469 = vpop.permute.xlu0 %1468
          %1470 = vrot.lane.b32.xlu0 %v1412, 64
          %v1471 = vpop.permute.xlu0 %1470
          %1472 = vrot.lane.b32.xlu0 %v1413, 64
          %v1473 = vpop.permute.xlu0 %1472
          %1474 = vrot.lane.b32.xlu0 %v1414, 64
          %v1475 = vpop.permute.xlu0 %1474
          %1476 = vrot.lane.b32.xlu0 %v1415, 64
          %v1477 = vpop.permute.xlu0 %1476
          %1478 = vrot.lane.b32.xlu0 %v1416, 64
          %v1479 = vpop.permute.xlu0 %1478
          %1480 = vrot.lane.b32.xlu0 %v1417, 64
          %v1481 = vpop.permute.xlu0 %1480
          %1482 = vrot.lane.b32.xlu0 %v1418, 64
          %v1483 = vpop.permute.xlu0 %1482
          %1484 = vrot.lane.b32.xlu0 %v1419, 64
          %v1485 = vpop.permute.xlu0 %1484
          %1486 = vrot.lane.b32.xlu0 %v1420, 64
          %v1487 = vpop.permute.xlu0 %1486
          %1488 = vrot.lane.b32.xlu0 %v1421, 64
          %v1489 = vpop.permute.xlu0 %1488
          %1490 = vrot.lane.b32.xlu0 %v1422, 64
          %v1491 = vpop.permute.xlu0 %1490
          %1492 = vrot.lane.b32.xlu0 %v1423, 64
          %v1493 = vpop.permute.xlu0 %1492
          %1494 = vrot.lane.b32.xlu0 %v1424, 64
          %v1495 = vpop.permute.xlu0 %1494
          %1496 = vrot.lane.b32.xlu0 %v1425, 64
          %v1497 = vpop.permute.xlu0 %1496
          %1498 = vrot.lane.b32.xlu0 %v1426, 64
          %v1499 = vpop.permute.xlu0 %1498
          %1500 = vrot.lane.b32.xlu0 %v1427, 64
          %v1501 = vpop.permute.xlu0 %1500
          %1502 = vrot.lane.b32.xlu0 %v1428, 64
          %v1503 = vpop.permute.xlu0 %1502
          %1504 = vrot.lane.b32.xlu0 %v1429, 64
          %v1505 = vpop.permute.xlu0 %1504
          %1506 = vrot.lane.b32.xlu0 %v1430, 64
          %v1507 = vpop.permute.xlu0 %1506
          %1508 = vrot.lane.b32.xlu0 %v1431, 64
          %v1509 = vpop.permute.xlu0 %1508
          %1510 = vrot.lane.b32.xlu0 %v1432, 64
          %v1511 = vpop.permute.xlu0 %1510
          %1512 = vrot.lane.b32.xlu0 %v1433, 64
          %v1513 = vpop.permute.xlu0 %1512
          %1514 = vrot.lane.b32.xlu0 %v1434, 64
          %v1515 = vpop.permute.xlu0 %1514
          %v1543 = vsel %vm1322, %v1381, %v1463
          %v1544 = vsel %vm1322, %v1382, %v1465
          %v1545 = vsel %vm1322, %v1383, %v1467
          %v1546 = vsel %vm1322, %v1384, %v1469
          %v1547 = vsel %vm1322, %v1385, %v1471
          %v1548 = vsel %vm1322, %v1386, %v1473
          %v1549 = vsel %vm1322, %v1387, %v1475
          %v1550 = vsel %vm1322, %v1388, %v1477
          %v1551 = vsel %vm1322, %v1389, %v1479
          %v1552 = vsel %vm1322, %v1390, %v1481
          %v1553 = vsel %vm1322, %v1391, %v1483
          %v1554 = vsel %vm1322, %v1392, %v1485
          %v1555 = vsel %vm1322, %v1393, %v1487
          %v1556 = vsel %vm1322, %v1394, %v1489
          %v1557 = vsel %vm1322, %v1395, %v1491
          %v1558 = vsel %vm1322, %v1396, %v1493
          %v1559 = vsel %vm1322, %v1397, %v1495
          %v1560 = vsel %vm1322, %v1398, %v1497
          %v1561 = vsel %vm1322, %v1399, %v1499
          %v1562 = vsel %vm1322, %v1400, %v1501
          %v1563 = vsel %vm1322, %v1401, %v1503
          %v1564 = vsel %vm1322, %v1402, %v1505
          %v1565 = vsel %vm1322, %v1403, %v1507
          %v1566 = vsel %vm1322, %v1404, %v1509
          %v1567 = vsel %vm1322, %v1405, %v1511
          %v1568 = vsel %vm1322, %v1406, %v1513
          %v1569 = vsel %vm1322, %v1407, %v1515
          %v1570 = vadd.f32 %v1543, %v1544
          %v1571 = vadd.f32 %v1570, %v1545
          %v1572 = vadd.f32 %v1571, %v1546
          %v1573 = vadd.f32 %v1572, %v1547
          %v1574 = vadd.f32 %v1573, %v1548
          %v1575 = vadd.f32 %v1574, %v1549
          %v1576 = vadd.f32 %v1575, %v1550
          %v1577 = vadd.f32 %v1576, %v1551
          %v1578 = vadd.f32 %v1577, %v1552
          %v1579 = vadd.f32 %v1578, %v1553
          %v1580 = vadd.f32 %v1579, %v1554
          %v1581 = vadd.f32 %v1580, %v1555
          %v1582 = vadd.f32 %v1581, %v1556
          %v1583 = vadd.f32 %v1582, %v1557
          %v1584 = vadd.f32 %v1583, %v1558
          %v1585 = vadd.f32 %v1584, %v1559
          %v1586 = vadd.f32 %v1585, %v1560
          %v1587 = vadd.f32 %v1586, %v1561
          %v1588 = vadd.f32 %v1587, %v1562
          %v1589 = vadd.f32 %v1588, %v1563
          %v1590 = vadd.f32 %v1589, %v1564
          %v1591 = vadd.f32 %v1590, %v1565
          %v1592 = vadd.f32 %v1591, %v1566
          %v1593 = vadd.f32 %v1592, %v1567
          %v1594 = vadd.f32 %v1593, %v1568
          %v1595 = vadd.f32 %v1594, %v1569
          %v1596 = vrot.slane %v1595, 4
          %v1597 = vadd.f32 %v1595, %v1596
          %v1598 = vrot.slane %v1597, 2
          %v1599 = vadd.f32 %v1597, %v1598
          %v1600 = vrot.slane %v1599, 1
          %v1601 = vadd.f32 %v1599, %v1600
          %1603 = vrot.lane.b32.xlu0 %v1601, 64
          %v1604 = vpop.permute.xlu0 %1603
          %v1606 = vadd.f32 %v1601, %v1604
          %v1607 = vmul.f32 %v1606, 0.0023148148
          %1609 = vrot.lane.b32.xlu0 %v1607, 64
          %v1610 = vpop.permute.xlu0 %1609
          %v1612 = vsel %vm1322, %v1607, %v1610
          %v1613 = vlaneseq
          %v1614 = vshrl.u32 %v1613, 7
          %v1615 = vsub.s32 0, %v1614
          %v1616 = vrot.slane %v1612, %v1615
          %v1617 = vsub.f32 %v1543, %v1616
          %v1618 = vsub.f32 %v1544, %v1616
          %v1619 = vsub.f32 %v1545, %v1616
          %v1620 = vsub.f32 %v1546, %v1616
          %v1621 = vsub.f32 %v1547, %v1616
          %v1622 = vsub.f32 %v1548, %v1616
          %v1623 = vsub.f32 %v1549, %v1616
          %v1624 = vsub.f32 %v1550, %v1616
          %v1625 = vsub.f32 %v1551, %v1616
          %v1626 = vsub.f32 %v1552, %v1616
          %v1627 = vsub.f32 %v1553, %v1616
          %v1628 = vsub.f32 %v1554, %v1616
          %v1629 = vsub.f32 %v1555, %v1616
          %v1630 = vsub.f32 %v1556, %v1616
          %v1631 = vsub.f32 %v1557, %v1616
          %v1632 = vsub.f32 %v1558, %v1616
          %v1633 = vsub.f32 %v1559, %v1616
          %v1634 = vsub.f32 %v1560, %v1616
          %v1635 = vsub.f32 %v1561, %v1616
          %v1636 = vsub.f32 %v1562, %v1616
          %v1637 = vsub.f32 %v1563, %v1616
          %v1638 = vsub.f32 %v1564, %v1616
          %v1639 = vsub.f32 %v1565, %v1616
          %v1640 = vsub.f32 %v1566, %v1616
          %v1641 = vsub.f32 %v1567, %v1616
          %v1642 = vsub.f32 %v1568, %v1616
          %v1643 = vsub.f32 %v1569, %v1616
          %v1644 = vmul.f32 %v1617, %v1617
          %v1645 = vmul.f32 %v1618, %v1618
          %v1646 = vmul.f32 %v1619, %v1619
          %v1647 = vmul.f32 %v1620, %v1620
          %v1648 = vmul.f32 %v1621, %v1621
          %v1649 = vmul.f32 %v1622, %v1622
          %v1650 = vmul.f32 %v1623, %v1623
          %v1651 = vmul.f32 %v1624, %v1624
          %v1652 = vmul.f32 %v1625, %v1625
          %v1653 = vmul.f32 %v1626, %v1626
          %v1654 = vmul.f32 %v1627, %v1627
          %v1655 = vmul.f32 %v1628, %v1628
          %v1656 = vmul.f32 %v1629, %v1629
          %v1657 = vmul.f32 %v1630, %v1630
          %v1658 = vmul.f32 %v1631, %v1631
          %v1659 = vmul.f32 %v1632, %v1632
          %v1660 = vmul.f32 %v1633, %v1633
          %v1661 = vmul.f32 %v1634, %v1634
          %v1662 = vmul.f32 %v1635, %v1635
          %v1663 = vmul.f32 %v1636, %v1636
          %v1664 = vmul.f32 %v1637, %v1637
          %v1665 = vmul.f32 %v1638, %v1638
          %v1666 = vmul.f32 %v1639, %v1639
          %v1667 = vmul.f32 %v1640, %v1640
          %v1668 = vmul.f32 %v1641, %v1641
          %v1669 = vmul.f32 %v1642, %v1642
          %v1670 = vmul.f32 %v1643, %v1643
          %v1671 = vadd.f32 %v1644, %v1645
          %v1672 = vadd.f32 %v1671, %v1646
          %v1673 = vadd.f32 %v1672, %v1647
          %v1674 = vadd.f32 %v1673, %v1648
          %v1675 = vadd.f32 %v1674, %v1649
          %v1676 = vadd.f32 %v1675, %v1650
          %v1677 = vadd.f32 %v1676, %v1651
          %v1678 = vadd.f32 %v1677, %v1652
          %v1679 = vadd.f32 %v1678, %v1653
          %v1680 = vadd.f32 %v1679, %v1654
          %v1681 = vadd.f32 %v1680, %v1655
          %v1682 = vadd.f32 %v1681, %v1656
          %v1683 = vadd.f32 %v1682, %v1657
          %v1684 = vadd.f32 %v1683, %v1658
          %v1685 = vadd.f32 %v1684, %v1659
          %v1686 = vadd.f32 %v1685, %v1660
          %v1687 = vadd.f32 %v1686, %v1661
          %v1688 = vadd.f32 %v1687, %v1662
          %v1689 = vadd.f32 %v1688, %v1663
          %v1690 = vadd.f32 %v1689, %v1664
          %v1691 = vadd.f32 %v1690, %v1665
          %v1692 = vadd.f32 %v1691, %v1666
          %v1693 = vadd.f32 %v1692, %v1667
          %v1694 = vadd.f32 %v1693, %v1668
          %v1695 = vadd.f32 %v1694, %v1669
          %v1696 = vadd.f32 %v1695, %v1670
          %v1697 = vrot.slane %v1696, 4
          %v1698 = vadd.f32 %v1696, %v1697
          %v1699 = vrot.slane %v1698, 2
          %v1700 = vadd.f32 %v1698, %v1699
          %v1701 = vrot.slane %v1700, 1
          %v1702 = vadd.f32 %v1700, %v1701
          %1704 = vrot.lane.b32.xlu0 %v1702, 64
          %v1705 = vpop.permute.xlu0 %1704
          %v1707 = vadd.f32 %v1702, %v1705
          %v1708 = vmul.f32 %v1707, 0.0023148148
          %v1709 = vld [vmem:[%s2] sm:$0x1]
          %v1710 = vadd.f32 %v1708, 1e-05
          %v1711 = vrsqrt.pop %v1710
          %v1712 = vmul.f32 %v1709, %v1711
          %v1714 = vlaneseq
          %v1715 = vshrl.u32 %v1714, 7
          %v1716 = vsub.s32 0, %v1715
          %v1717 = vrot.slane %v1712, %v1716
          %1718 = vrot.lane.b32.xlu0 %v1717, 64
          %v1719 = vpop.permute.xlu0 %1718
          %v1721 = vsel %vm1322, %v1712, %v1719
          %v1722 = vlaneseq
          %v1723 = vshrl.u32 %v1722, 7
          %v1724 = vsub.s32 0, %v1723
          %v1725 = vrot.slane %v1721, %v1724
          %v1726 = vmul.f32 %v1617, %v1725
          %v1727 = vmul.f32 %v1618, %v1725
          %v1728 = vmul.f32 %v1619, %v1725
          %v1729 = vmul.f32 %v1620, %v1725
          %v1730 = vmul.f32 %v1621, %v1725
          %v1731 = vmul.f32 %v1622, %v1725
          %v1732 = vmul.f32 %v1623, %v1725
          %v1733 = vmul.f32 %v1624, %v1725
          %v1734 = vmul.f32 %v1625, %v1725
          %v1735 = vmul.f32 %v1626, %v1725
          %v1736 = vmul.f32 %v1627, %v1725
          %v1737 = vmul.f32 %v1628, %v1725
          %v1738 = vmul.f32 %v1629, %v1725
          %v1739 = vmul.f32 %v1630, %v1725
          %v1740 = vmul.f32 %v1631, %v1725
          %v1741 = vmul.f32 %v1632, %v1725
          %v1742 = vmul.f32 %v1633, %v1725
          %v1743 = vmul.f32 %v1634, %v1725
          %v1744 = vmul.f32 %v1635, %v1725
          %v1745 = vmul.f32 %v1636, %v1725
          %v1746 = vmul.f32 %v1637, %v1725
          %v1747 = vmul.f32 %v1638, %v1725
          %v1748 = vmul.f32 %v1639, %v1725
          %v1749 = vmul.f32 %v1640, %v1725
          %v1750 = vmul.f32 %v1641, %v1725
          %v1751 = vmul.f32 %v1642, %v1725
          %v1752 = vmul.f32 %v1643, %v1725
          %v1753 = vld [vmem:[%s3] sm:$0x1]
          %v1755 = vlaneseq
          %v1756 = vshrl.u32 %v1755, 7
          %v1757 = vsub.s32 0, %v1756
          %v1758 = vrot.slane %v1753, %v1757
          %1759 = vrot.lane.b32.xlu0 %v1758, 64
          %v1760 = vpop.permute.xlu0 %1759
          %v1762 = vsel %vm1322, %v1753, %v1760
          %v1763 = vlaneseq
          %v1764 = vshrl.u32 %v1763, 7
          %v1765 = vsub.s32 0, %v1764
          %v1766 = vrot.slane %v1762, %v1765
          %v1767 = vadd.f32 %v1726, %v1766
          %v1768 = vadd.f32 %v1727, %v1766
          %v1769 = vadd.f32 %v1728, %v1766
          %v1770 = vadd.f32 %v1729, %v1766
          %v1771 = vadd.f32 %v1730, %v1766
          %v1772 = vadd.f32 %v1731, %v1766
          %v1773 = vadd.f32 %v1732, %v1766
          %v1774 = vadd.f32 %v1733, %v1766
          %v1775 = vadd.f32 %v1734, %v1766
          %v1776 = vadd.f32 %v1735, %v1766
          %v1777 = vadd.f32 %v1736, %v1766
          %v1778 = vadd.f32 %v1737, %v1766
          %v1779 = vadd.f32 %v1738, %v1766
          %v1780 = vadd.f32 %v1739, %v1766
          %v1781 = vadd.f32 %v1740, %v1766
          %v1782 = vadd.f32 %v1741, %v1766
          %v1783 = vadd.f32 %v1742, %v1766
          %v1784 = vadd.f32 %v1743, %v1766
          %v1785 = vadd.f32 %v1744, %v1766
          %v1786 = vadd.f32 %v1745, %v1766
          %v1787 = vadd.f32 %v1746, %v1766
          %v1788 = vadd.f32 %v1747, %v1766
          %v1789 = vadd.f32 %v1748, %v1766
          %v1790 = vadd.f32 %v1749, %v1766
          %v1791 = vadd.f32 %v1750, %v1766
          %v1792 = vadd.f32 %v1751, %v1766
          %v1793 = vadd.f32 %v1752, %v1766
          %v1794 = vmax.f32 %v1767, 0.0
          %v1795 = vmax.f32 %v1768, 0.0
          %v1796 = vmax.f32 %v1769, 0.0
          %v1797 = vmax.f32 %v1770, 0.0
          %v1798 = vmax.f32 %v1771, 0.0
          %v1799 = vmax.f32 %v1772, 0.0
          %v1800 = vmax.f32 %v1773, 0.0
          %v1801 = vmax.f32 %v1774, 0.0
          %v1802 = vmax.f32 %v1775, 0.0
          %v1803 = vmax.f32 %v1776, 0.0
          %v1804 = vmax.f32 %v1777, 0.0
          %v1805 = vmax.f32 %v1778, 0.0
          %v1806 = vmax.f32 %v1779, 0.0
          %v1807 = vmax.f32 %v1780, 0.0
          %v1808 = vmax.f32 %v1781, 0.0
          %v1809 = vmax.f32 %v1782, 0.0
          %v1810 = vmax.f32 %v1783, 0.0
          %v1811 = vmax.f32 %v1784, 0.0
          %v1812 = vmax.f32 %v1785, 0.0
          %v1813 = vmax.f32 %v1786, 0.0
          %v1814 = vmax.f32 %v1787, 0.0
          %v1815 = vmax.f32 %v1788, 0.0
          %v1816 = vmax.f32 %v1789, 0.0
          %v1817 = vmax.f32 %v1790, 0.0
          %v1818 = vmax.f32 %v1791, 0.0
          %v1819 = vmax.f32 %v1792, 0.0
          %v1820 = vmax.f32 %v1793, 0.0
          %vm1826 = vcmask 1043456
          %v1827 = vrot.slane %v1798, 4
          %v1828 = vrot.slane %v1799, 4
          %v1829 = vsel %vm1826, %v1827, %v1828
          %v1830 = vrot.slane %v1800, 4
          %v1831 = vsel %vm1826, %v1828, %v1830
          %v1832 = vrot.slane %v1801, 4
          %v1833 = vsel %vm1826, %v1830, %v1832
          %v1834 = vrot.slane %v1802, 4
          %v1835 = vsel %vm1826, %v1832, %v1834
          %v1841 = vmax.f32 %v1794, %v1829
          %v1842 = vmax.f32 %v1795, %v1831
          %v1843 = vmax.f32 %v1796, %v1833
          %v1844 = vmax.f32 %v1797, %v1835
          %v1845 = vmax.f32 %v1798, %v1834
          %vm1848 = vcmask 1041408
          %v1849 = vrot.slane %v1841, 6
          %v1850 = vrot.slane %v1842, 6
          %v1851 = vsel %vm1848, %v1849, %v1850
          %v1853 = vmax.f32 %v1841, %v1851
          %v1854 = vsel %vm1848, %v1853, -inf
          %v1855 = vrot.slane %v1854, 4
          %v1856 = vmax.f32 %v1854, %v1855
          %v1857 = vrot.slane %v1856, 2
          %v1858 = vmax.f32 %v1856, %v1857
          %v1859 = vrot.slane %v1858, 1
          %v1860 = vmax.f32 %v1858, %v1859
          %vm1861 = vcmask 1043457
          %v1862 = vsel %vm1861, %v1853, -inf
          %v1863 = vrot.slane %v1862, 4
          %v1864 = vmax.f32 %v1862, %v1863
          %v1865 = vrot.slane %v1864, 2
          %v1866 = vmax.f32 %v1864, %v1865
          %v1867 = vrot.slane %v1866, 1
          %v1868 = vmax.f32 %v1866, %v1867
          %vm1869 = vcmask 1045507
          %v1870 = vsel %vm1869, %v1853, -inf
          %v1871 = vrot.slane %v1870, 4
          %v1872 = vmax.f32 %v1870, %v1871
          %v1873 = vrot.slane %v1872, 2
          %v1874 = vmax.f32 %v1872, %v1873
          %v1875 = vrot.slane %v1874, 1
          %v1876 = vmax.f32 %v1874, %v1875
          %v1878 = vrot.slane %v1843, 6
          %v1879 = vsel %vm1848, %v1850, %v1878
          %v1882 = vmax.f32 %v1841, %v1850
          %v1883 = vmax.f32 %v1842, %v1879
          %v1884 = vrot.slane %v1843, 4
          %v1886 = vmax.f32 %v1882, %v1884
          %v1887 = vmax.f32 %v1883, %v1884
          %vm1888 = vcmask 1047558
          %v1889 = vsel %vm1888, %v1886, -inf
          %v1890 = vrot.slane %v1889, 4
          %v1891 = vmax.f32 %v1889, %v1890
          %v1892 = vrot.slane %v1891, 2
          %v1893 = vmax.f32 %v1891, %v1892
          %v1894 = vrot.slane %v1893, 1
          %v1895 = vmax.f32 %v1893, %v1894
          %vm1896 = vcmask 1047559
          %v1897 = vsel %vm1896, %v1886, -inf
          %v1898 = vsel %vm1848, %v1887, -inf
          %v1899 = vmax.f32 %v1897, %v1898
          %v1900 = vrot.slane %v1899, 4
          %v1901 = vmax.f32 %v1899, %v1900
          %v1902 = vrot.slane %v1901, 2
          %v1903 = vmax.f32 %v1901, %v1902
          %v1904 = vrot.slane %v1903, 1
          %v1905 = vmax.f32 %v1903, %v1904
          %v1906 = vsel %vm1861, %v1887, -inf
          %v1907 = vrot.slane %v1906, 4
          %v1908 = vmax.f32 %v1906, %v1907
          %v1909 = vrot.slane %v1908, 2
          %v1910 = vmax.f32 %v1908, %v1909
          %v1911 = vrot.slane %v1910, 1
          %v1912 = vmax.f32 %v1910, %v1911
          %v1914 = vrot.slane %v1844, 6
          %v1916 = vmax.f32 %v1843, %v1914
          %v1918 = vrot.slane %v1844, 4
          %v1919 = vrot.slane %v1845, 4
          %v1920 = vsel %vm1826, %v1918, %v1919
          %v1922 = vmax.f32 %v1916, %v1920
          %vm1923 = vcmask 1043458
          %v1924 = vsel %vm1923, %v1922, -inf
          %v1925 = vrot.slane %v1924, 4
          %v1926 = vmax.f32 %v1924, %v1925
          %v1927 = vrot.slane %v1926, 2
          %v1928 = vmax.f32 %v1926, %v1927
          %v1929 = vrot.slane %v1928, 1
          %v1930 = vmax.f32 %v1928, %v1929
          %v1931 = vsel %vm1869, %v1922, -inf
          %v1932 = vrot.slane %v1931, 4
          %v1933 = vmax.f32 %v1931, %v1932
          %v1934 = vrot.slane %v1933, 2
          %v1935 = vmax.f32 %v1933, %v1934
          %v1936 = vrot.slane %v1935, 1
          %v1937 = vmax.f32 %v1935, %v1936
          %vm1938 = vcmask 1047557
          %v1939 = vsel %vm1938, %v1922, -inf
          %v1940 = vrot.slane %v1939, 4
          %v1941 = vmax.f32 %v1939, %v1940
          %v1942 = vrot.slane %v1941, 2
          %v1943 = vmax.f32 %v1941, %v1942
          %v1944 = vrot.slane %v1943, 1
          %v1945 = vmax.f32 %v1943, %v1944
          %v1951 = vrot.slane %v1803, 4
          %v1952 = vrot.slane %v1804, 4
          %v1953 = vsel %vm1826, %v1951, %v1952
          %v1954 = vrot.slane %v1805, 4
          %v1955 = vsel %vm1826, %v1952, %v1954
          %v1956 = vrot.slane %v1806, 4
          %v1957 = vsel %vm1826, %v1954, %v1956
          %v1958 = vrot.slane %v1807, 4
          %v1959 = vsel %vm1826, %v1956, %v1958
          %v1965 = vmax.f32 %v1798, %v1951
          %v1966 = vmax.f32 %v1799, %v1953
          %v1967 = vmax.f32 %v1800, %v1955
          %v1968 = vmax.f32 %v1801, %v1957
          %v1969 = vmax.f32 %v1802, %v1959
          %v1970 = vmax.f32 %v1965, %v1807
          %v1971 = vmax.f32 %v1966, %v1808
          %v1972 = vmax.f32 %v1967, %v1809
          %v1973 = vmax.f32 %v1968, %v1810
          %v1974 = vmax.f32 %v1969, %v1811
          %v1976 = vrot.slane %v1971, 6
          %v1978 = vmax.f32 %v1970, %v1976
          %v1979 = vmax.f32 %v1971, %v1976
          %vm1980 = vcmask 1045508
          %v1981 = vsel %vm1980, %v1978, -inf
          %v1982 = vrot.slane %v1981, 4
          %v1983 = vmax.f32 %v1981, %v1982
          %v1984 = vrot.slane %v1983, 2
          %v1985 = vmax.f32 %v1983, %v1984
          %v1986 = vrot.slane %v1985, 1
          %v1987 = vmax.f32 %v1985, %v1986
          %v1988 = vsel %vm1938, %v1978, -inf
          %v1989 = vrot.slane %v1988, 4
          %v1990 = vmax.f32 %v1988, %v1989
          %v1991 = vrot.slane %v1990, 2
          %v1992 = vmax.f32 %v1990, %v1991
          %v1993 = vrot.slane %v1992, 1
          %v1994 = vmax.f32 %v1992, %v1993
          %v1995 = vsel %vm1896, %v1978, -inf
          %v1996 = vsel %vm1848, %v1979, -inf
          %v1997 = vmax.f32 %v1995, %v1996
          %v1998 = vrot.slane %v1997, 4
          %v1999 = vmax.f32 %v1997, %v1998
          %v2000 = vrot.slane %v1999, 2
          %v2001 = vmax.f32 %v1999, %v2000
          %v2002 = vrot.slane %v2001, 1
          %v2003 = vmax.f32 %v2001, %v2002
          %v2005 = vrot.slane %v1972, 6
          %v2007 = vmax.f32 %v1971, %v2005
          %v2009 = vrot.slane %v1972, 4
          %v2010 = vrot.slane %v1973, 4
          %v2011 = vsel %vm1826, %v2009, %v2010
          %v2013 = vmax.f32 %v2007, %v2011
          %v2014 = vsel %vm1923, %v2013, -inf
          %v2015 = vrot.slane %v2014, 4
          %v2016 = vmax.f32 %v2014, %v2015
          %v2017 = vrot.slane %v2016, 2
          %v2018 = vmax.f32 %v2016, %v2017
          %v2019 = vrot.slane %v2018, 1
          %v2020 = vmax.f32 %v2018, %v2019
          %v2021 = vsel %vm1869, %v2013, -inf
          %v2022 = vrot.slane %v2021, 4
          %v2023 = vmax.f32 %v2021, %v2022
          %v2024 = vrot.slane %v2023, 2
          %v2025 = vmax.f32 %v2023, %v2024
          %v2026 = vrot.slane %v2025, 1
          %v2027 = vmax.f32 %v2025, %v2026
          %v2028 = vsel %vm1938, %v2013, -inf
          %v2029 = vrot.slane %v2028, 4
          %v2030 = vmax.f32 %v2028, %v2029
          %v2031 = vrot.slane %v2030, 2
          %v2032 = vmax.f32 %v2030, %v2031
          %v2033 = vrot.slane %v2032, 1
          %v2034 = vmax.f32 %v2032, %v2033
          %v2036 = vrot.slane %v1973, 6
          %v2037 = vrot.slane %v1974, 6
          %v2038 = vsel %vm1848, %v2036, %v2037
          %v2041 = vmax.f32 %v1972, %v2036
          %v2042 = vmax.f32 %v1973, %v2038
          %v2043 = vrot.slane %v1974, 4
          %v2045 = vmax.f32 %v2041, %v2043
          %v2046 = vmax.f32 %v2042, %v2043
          %v2047 = vsel %vm1888, %v2045, -inf
          %v2048 = vrot.slane %v2047, 4
          %v2049 = vmax.f32 %v2047, %v2048
          %v2050 = vrot.slane %v2049, 2
          %v2051 = vmax.f32 %v2049, %v2050
          %v2052 = vrot.slane %v2051, 1
          %v2053 = vmax.f32 %v2051, %v2052
          %v2054 = vsel %vm1896, %v2045, -inf
          %v2055 = vsel %vm1848, %v2046, -inf
          %v2056 = vmax.f32 %v2054, %v2055
          %v2057 = vrot.slane %v2056, 4
          %v2058 = vmax.f32 %v2056, %v2057
          %v2059 = vrot.slane %v2058, 2
          %v2060 = vmax.f32 %v2058, %v2059
          %v2061 = vrot.slane %v2060, 1
          %v2062 = vmax.f32 %v2060, %v2061
          %v2063 = vsel %vm1861, %v2046, -inf
          %v2064 = vrot.slane %v2063, 4
          %v2065 = vmax.f32 %v2063, %v2064
          %v2066 = vrot.slane %v2065, 2
          %v2067 = vmax.f32 %v2065, %v2066
          %v2068 = vrot.slane %v2067, 1
          %v2069 = vmax.f32 %v2067, %v2068
          %v2075 = vrot.slane %v1812, 4
          %v2076 = vrot.slane %v1813, 4
          %v2077 = vsel %vm1826, %v2075, %v2076
          %v2078 = vrot.slane %v1814, 4
          %v2079 = vsel %vm1826, %v2076, %v2078
          %v2080 = vrot.slane %v1815, 4
          %v2081 = vsel %vm1826, %v2078, %v2080
          %v2082 = vrot.slane %v1816, 4
          %v2083 = vsel %vm1826, %v2080, %v2082
          %v2089 = vmax.f32 %v1807, %v2075
          %v2090 = vmax.f32 %v1808, %v2077
          %v2091 = vmax.f32 %v1809, %v2079
          %v2092 = vmax.f32 %v1810, %v2081
          %v2093 = vmax.f32 %v1811, %v2083
          %v2094 = vmax.f32 %v2089, %v1816
          %v2095 = vmax.f32 %v2090, %v1817
          %v2096 = vmax.f32 %v2091, %v1818
          %v2097 = vmax.f32 %v2092, %v1819
          %v2098 = vmax.f32 %v2093, %v1820
          %v2100 = vrot.slane %v2095, 6
          %v2102 = vmax.f32 %v2094, %v2100
          %v2103 = vmax.f32 %v2095, %v2100
          %v2104 = vsel %vm1980, %v2102, -inf
          %v2105 = vrot.slane %v2104, 4
          %v2106 = vmax.f32 %v2104, %v2105
          %v2107 = vrot.slane %v2106, 2
          %v2108 = vmax.f32 %v2106, %v2107
          %v2109 = vrot.slane %v2108, 1
          %v2110 = vmax.f32 %v2108, %v2109
          %v2111 = vsel %vm1938, %v2102, -inf
          %v2112 = vrot.slane %v2111, 4
          %v2113 = vmax.f32 %v2111, %v2112
          %v2114 = vrot.slane %v2113, 2
          %v2115 = vmax.f32 %v2113, %v2114
          %v2116 = vrot.slane %v2115, 1
          %v2117 = vmax.f32 %v2115, %v2116
          %v2118 = vsel %vm1896, %v2102, -inf
          %v2119 = vsel %vm1848, %v2103, -inf
          %v2120 = vmax.f32 %v2118, %v2119
          %v2121 = vrot.slane %v2120, 4
          %v2122 = vmax.f32 %v2120, %v2121
          %v2123 = vrot.slane %v2122, 2
          %v2124 = vmax.f32 %v2122, %v2123
          %v2125 = vrot.slane %v2124, 1
          %v2126 = vmax.f32 %v2124, %v2125
          %v2128 = vrot.slane %v2096, 6
          %v2130 = vmax.f32 %v2095, %v2128
          %v2132 = vrot.slane %v2096, 4
          %v2133 = vrot.slane %v2097, 4
          %v2134 = vsel %vm1826, %v2132, %v2133
          %v2136 = vmax.f32 %v2130, %v2134
          %v2137 = vsel %vm1923, %v2136, -inf
          %v2138 = vrot.slane %v2137, 4
          %v2139 = vmax.f32 %v2137, %v2138
          %v2140 = vrot.slane %v2139, 2
          %v2141 = vmax.f32 %v2139, %v2140
          %v2142 = vrot.slane %v2141, 1
          %v2143 = vmax.f32 %v2141, %v2142
          %v2144 = vsel %vm1869, %v2136, -inf
          %v2145 = vrot.slane %v2144, 4
          %v2146 = vmax.f32 %v2144, %v2145
          %v2147 = vrot.slane %v2146, 2
          %v2148 = vmax.f32 %v2146, %v2147
          %v2149 = vrot.slane %v2148, 1
          %v2150 = vmax.f32 %v2148, %v2149
          %v2151 = vsel %vm1938, %v2136, -inf
          %v2152 = vrot.slane %v2151, 4
          %v2153 = vmax.f32 %v2151, %v2152
          %v2154 = vrot.slane %v2153, 2
          %v2155 = vmax.f32 %v2153, %v2154
          %v2156 = vrot.slane %v2155, 1
          %v2157 = vmax.f32 %v2155, %v2156
          %v2159 = vrot.slane %v2097, 6
          %v2160 = vrot.slane %v2098, 6
          %v2161 = vsel %vm1848, %v2159, %v2160
          %v2164 = vmax.f32 %v2096, %v2159
          %v2165 = vmax.f32 %v2097, %v2161
          %v2166 = vrot.slane %v2098, 4
          %v2168 = vmax.f32 %v2164, %v2166
          %v2169 = vmax.f32 %v2165, %v2166
          %v2170 = vsel %vm1888, %v2168, -inf
          %v2171 = vrot.slane %v2170, 4
          %v2172 = vmax.f32 %v2170, %v2171
          %v2173 = vrot.slane %v2172, 2
          %v2174 = vmax.f32 %v2172, %v2173
          %v2175 = vrot.slane %v2174, 1
          %v2176 = vmax.f32 %v2174, %v2175
          %v2177 = vsel %vm1896, %v2168, -inf
          %v2178 = vsel %vm1848, %v2169, -inf
          %v2179 = vmax.f32 %v2177, %v2178
          %v2180 = vrot.slane %v2179, 4
          %v2181 = vmax.f32 %v2179, %v2180
          %v2182 = vrot.slane %v2181, 2
          %v2183 = vmax.f32 %v2181, %v2182
          %v2184 = vrot.slane %v2183, 1
          %v2185 = vmax.f32 %v2183, %v2184
          %v2186 = vsel %vm1861, %v2169, -inf
          %v2187 = vrot.slane %v2186, 4
          %v2188 = vmax.f32 %v2186, %v2187
          %v2189 = vrot.slane %v2188, 2
          %v2190 = vmax.f32 %v2188, %v2189
          %v2191 = vrot.slane %v2190, 1
          %v2192 = vmax.f32 %v2190, %v2191
          %vm2193 = vcmask 1040384
          %v2194 = vsel %vm2193, %v1860, %v1868
          %v2195 = vsel %vm1848, %v2194, %v1876
          %vm2196 = vcmask 1042432
          %v2197 = vsel %vm2196, %v2195, %v1895
          %v2198 = vsel %vm1826, %v2197, %v1905
          %vm2199 = vcmask 1044480
          %v2200 = vsel %vm2199, %v2198, %v1912
          %vm2201 = vcmask 1045504
          %v2202 = vsel %vm2201, %v2200, %v1930
          %vm2203 = vcmask 1046528
          %v2204 = vsel %vm2203, %v2202, %v1937
          %v2205 = vsel %vm2193, %v1945, %v1987
          %v2206 = vsel %vm1848, %v2205, %v1994
          %v2207 = vsel %vm2196, %v2206, %v2003
          %v2208 = vsel %vm1826, %v2207, %v2020
          %v2209 = vsel %vm2199, %v2208, %v2027
          %v2210 = vsel %vm2201, %v2209, %v2034
          %v2211 = vsel %vm2203, %v2210, %v2053
          %v2212 = vsel %vm2193, %v2062, %v2069
          %v2213 = vsel %vm1848, %v2212, %v2110
          %v2214 = vsel %vm2196, %v2213, %v2117
          %v2215 = vsel %vm1826, %v2214, %v2126
          %v2216 = vsel %vm2199, %v2215, %v2143
          %v2217 = vsel %vm2201, %v2216, %v2150
          %v2218 = vsel %vm2203, %v2217, %v2157
          %v2219 = vsel %vm2193, %v2176, %v2185
          %v2220 = vsel %vm1848, %v2219, %v2192
          %2221 = vst [vmem:[%s4] sm:$0xff] %v2204
          %2222 = vst [vmem:[%s4 + $0x8] sm:$0xff] %v2211
          %2223 = vst [vmem:[%s4 + $0x10] sm:$0xff] %v2218
          %2224 = vst [vmem:[%s4 + $0x18] sm:$0x7] %v2220
        $region82: #{initial_conv_forward.1} parent=69 // pred_fallthru
          _
        // Predicated region
        $region83: #{initial_conv_forward.1} parent=69 // pred_check
          %p2225 = pneg %p122
        $region84: #{initial_conv_forward.1} parent=69 // pred_check_branch
          %2227 = sbr.rel (%p2225) target = $region86
        $region85: #{initial_conv_forward.1} parent=69 // pred_region
          _
        $region86: #{initial_conv_forward.1} parent=69 // pred_fallthru
          _
        // Predicated region
        $region87: #{initial_conv_forward.1} parent=69 // pred_check
          %p2228 = pneg %p122
        $region88: #{initial_conv_forward.1} parent=69 // pred_check_branch
          %2230 = sbr.rel (%p2228) target = $region90
        $region89: #{initial_conv_forward.1} parent=69 // pred_region
          _
        $region90: #{initial_conv_forward.1} parent=69 // pred_fallthru
          _
      $region70: #{initial_conv_forward.1} parent=5 // pred_fallthru
        _
      %p2231 = scmp.le.s32.totalorder 2, %s10
      // Predicated region
      $region91: #{initial_conv_forward.1} parent=5 // pred_check
        %p2232 = pneg %p2231
      $region92: #{initial_conv_forward.1} parent=5 // pred_check_branch
        %2234 = sbr.rel (%p2232) target = $region94
      $region93: #{initial_conv_forward.1} parent=5 // pred_region
        %s2235 = ssub.s32 %s10, 2
      $region94: #{initial_conv_forward.1} parent=5 // pred_fallthru
        _
    $region6: #{initial_conv_forward.1} parent=1 // loop_footer
      %s14 = sadd.s32 1, %s10
    $region7: #{initial_conv_forward.1} parent=1 // loop_footer_branch
      %9 = sbr.rel target = $region3
    $region8: #{initial_conv_forward.1} parent=1 // loop_exit
      _

</llo_original>
